<compile_context>
chip_gen: v6e
topology: v6e:2x2x1
jax: 0.10.0
libtpu: 0.0.40
codegen_flags: <defaults>
</compile_context>

<pallas_src>
import math
from functools import partial

import jax
import jax.numpy as jnp
from jax.experimental import pallas as pl
from jax.experimental.pallas import tpu as pltpu


_NEG_SLOPE = 0.01          # PyTorch LeakyReLU(0.01)
_IN_DIM = 16               # torch.flatten(x) -> 16 features
_HIDDEN = [32, 64, 128, 256, 512]


def _round_up(n, m):
    return ((n + m - 1) // m) * m


def _cdiv(a, b):
    return -(-a // b)


def _leaky_relu(v, negative_slope=_NEG_SLOPE):
    return jnp.where(v > 0, v, negative_slope * v)


# ---------------------------------------------------------------------------
# Static device-generation heuristics (evaluated once at import).
# ---------------------------------------------------------------------------
def _device_kind():
    try:
        return jax.devices()[0].device_kind.lower()
    except Exception:
        return ""


_KIND = _device_kind()
# bf16 VPU epilogue only on v6e / v7x (older chips have no bf16 VALU).
_BF16_EPILOGUE = not any(t in _KIND for t in ("v2", "v3", "v4", "v5"))
# v7x has 2 TensorCores per chip that shard the "parallel" grid axis.
_MIN_GRID_TILES = 2 if "v7" in _KIND else 1


# ---------------------------------------------------------------------------
# Kernel: 6 matmuls + LeakyReLU over one (TM, 16) batch tile per grid step.
# ---------------------------------------------------------------------------
def decoder_kernel(x_ref, bias_ref,
                   w1_ref, w2_ref, w3_ref, w4_ref, w5_ref, w6_ref,
                   o_ref, *, folded, epilogue_dtype):
    w_refs = (w1_ref, w2_ref, w3_ref, w4_ref, w5_ref, w6_ref)
    last = len(w_refs) - 1
    h = x_ref[...]                                        # (TM, 16) bf16 (cast in wrapper)
    for i, w_ref in enumerate(w_refs):
        n = w_ref.shape[1]                                # padded out width
        z = jnp.dot(h, w_ref[...],
                    preferred_element_type=jnp.float32)   # f32 MXU accumulation
        if i == last:
            o_ref[...] = z + bias_ref[i:i + 1, :n]        # final layer: f32, no activation
        else:
            z = z.astype(epilogue_dtype)                  # bf16 epilogue on v6e/v7x, f32 on v5e
            if i not in folded:                           # layers 2-3 bias folded into MXU
                z = z + bias_ref[i:i + 1, :n].astype(epilogue_dtype)
            h = _leaky_relu(z).astype(jnp.bfloat16)       # bf16 feed for next matmul


# ---------------------------------------------------------------------------
# Parameter init (PyTorch nn.Linear style) + packing for the kernel.
# ---------------------------------------------------------------------------
def init_decoder_params(key, size):
    """f32 logical params, W stored (in_features, out_features): y = x @ W + b."""
    dims = [_IN_DIM] + _HIDDEN + [size[0] * size[1]]
    params = []
    for i in range(6):
        fan_in, fan_out = dims[i], dims[i + 1]
        key, kw, kb = jax.random.split(key, 3)
        bound = 1.0 / math.sqrt(float(fan_in))
        w = jax.random.uniform(kw, (fan_in, fan_out), jnp.float32, -bound, bound)
        b = jax.random.uniform(kb, (fan_out,), jnp.float32, -bound, bound)
        params.append((w, b))
    return params


def pack_params_for_kernel(params, fold_bias=True):
    """bf16 weights zero-padded to 128-multiple widths + packed f32 biases.

    When fold_bias is True, b2 and b3 are folded into W2/W3 via a constant-1.0
    carrier lane living in the padded columns (col 32 of layer-1 output, col 64
    of layer-2 output); returns the tuple of folded layer indices.
    """
    dims_out = [w.shape[1] for w, _ in params]
    pad_out = [_round_up(d, 128) for d in dims_out]
    pad_in = [params[0][0].shape[0]] + pad_out[:-1]      # layer i>0 input = prev padded out

    ws = []
    for i, (w, _) in enumerate(params):
        wp = jnp.zeros((pad_in[i], pad_out[i]), jnp.float32)
        wp = wp.at[:w.shape[0], :w.shape[1]].set(w)
        ws.append(wp)

    max_w = max(pad_out)
    bias = jnp.zeros((8, max_w), jnp.float32)            # 8 sublanes (6 used)
    for i, (_, b) in enumerate(params):
        bias = bias.at[i, :b.shape[0]].set(b)

    folded = ()
    if fold_bias:
        c1 = params[0][0].shape[1]                       # 32: first padded lane of layer-1 out
        c2 = params[1][0].shape[1]                       # 64: first padded lane of layer-2 out
        b2 = params[1][1]
        b3 = params[2][1]
        bias = bias.at[0, c1].set(1.0)                   # seed carrier via layer-1 bias add
        bias = bias.at[1].set(0.0)                       # rows 1,2 no longer used
        bias = bias.at[2].set(0.0)
        ws[1] = ws[1].at[c1, :b2.shape[0]].set(b2)       # b2 rides the carrier through MXU
        ws[1] = ws[1].at[c1, c2].set(1.0)                # carry constant-1 into layer-3 input
        ws[2] = ws[2].at[c2, :b3.shape[0]].set(b3)       # b3 rides the carrier through MXU
        folded = (1, 2)

    ws = tuple(w.astype(jnp.bfloat16) for w in ws)
    return bias, ws, folded


# ---------------------------------------------------------------------------
# Forward wrapper.
# ---------------------------------------------------------------------------
@partial(jax.jit,
         static_argnames=("size", "folded", "tm", "min_tiles", "bf16_epilogue"))
def decoder_forward(x, bias_packed, ws, *, size, folded=(),
                    tm=1024, min_tiles=_MIN_GRID_TILES,
                    bf16_epilogue=_BF16_EPILOGUE):
    """x: (B, 16) batch of rows, or any tensor with 16 elements (strict module
    semantics, B == 1).  Returns (B, size[0], size[1]) float32."""
    out_dim = size[0] * size[1]
    out_pad = ws[-1].shape[1]
    ep_dtype = jnp.bfloat16 if bf16_epilogue else jnp.float32

    x_flat = jnp.reshape(x, (-1, _IN_DIM)).astype(jnp.bfloat16)
    batch = x_flat.shape[0]

    # Tile / grid selection: at least `min_tiles` grid steps when the batch
    # justifies it (megacore sharding on v7x), and <= 7 padded rows per step.
    if batch > 8:
        num_tiles = max(_cdiv(batch, tm), min_tiles)
    else:
        num_tiles = 1
    tm_eff = _round_up(_cdiv(batch, num_tiles), 8)
    b_pad = tm_eff * num_tiles
    if b_pad != batch:
        x_flat = jnp.pad(x_flat, ((0, b_pad - batch), (0, 0)))

    grid = (num_tiles,)

    flops = 2 * b_pad * sum(int(w.shape[0]) * int(w.shape[1]) for w in ws)
    bytes_accessed = (
        sum(int(w.size) * w.dtype.itemsize for w in ws)
        + int(bias_packed.size) * bias_packed.dtype.itemsize
        + b_pad * _IN_DIM * 2
        + b_pad * out_pad * 4
    )

    in_specs = [
        pl.BlockSpec((tm_eff, _IN_DIM), lambda i: (i, 0)),      # x tile (bf16)
        pl.BlockSpec(bias_packed.shape, lambda i: (0, 0)),      # packed biases (resident)
    ] + [
        pl.BlockSpec(w.shape, lambda i: (0, 0)) for w in ws     # weights (resident)
    ]

    kernel = partial(decoder_kernel, folded=folded, epilogue_dtype=ep_dtype)

    out = pl.pallas_call(
        kernel,
        out_shape=jax.ShapeDtypeStruct((b_pad, out_pad), jnp.float32),
        grid=grid,
        in_specs=in_specs,
        out_specs=pl.BlockSpec((tm_eff, out_pad), lambda i: (i, 0)),
        compiler_params=pltpu.CompilerParams(
            dimension_semantics=("parallel",)),
        cost_estimate=pl.CostEstimate(
            flops=flops, transcendentals=0, bytes_accessed=bytes_accessed),
    )(x_flat, bias_packed, *ws)

    out = out[:batch, :out_dim]
    return jnp.reshape(out, (-1, size[0], size[1]))             # x.view(-1, s0, s1)


# ---------------------------------------------------------------------------
# Pure-JAX f32 reference (matches the PyTorch module math).
# ---------------------------------------------------------------------------
def decoder_forward_ref(x, params, size):
    h = jnp.reshape(x, (-1, _IN_DIM)).astype(jnp.float32)
    for i, (w, b) in enumerate(params):
        h = h @ w + b
        if i < len(params) - 1:
            h = _leaky_relu(h)
    return jnp.reshape(h, (-1, size[0], size[1]))


if __name__ == "__main__":
    size = (16, 16)                       # decoder output spatial size
    key = jax.random.PRNGKey(0)
    key, kx1, kx2, kx3 = jax.random.split(key, 4)

    params = init_decoder_params(key, size)                     # f32 logical params
    bias_packed, ws, folded = pack_params_for_kernel(params)    # bf16 padded kernel params

    def run(x, **kw):
        return jax.block_until_ready(
            decoder_forward(x, bias_packed, ws, size=size, folded=folded, **kw))

    ATOL, RTOL = 3e-2, 5e-2   # bf16 weights + bf16 epilogue vs f32 reference

    # (1) Strict module semantics: 16-element input (torch.flatten -> (1, 16)).
    x_single = jax.random.normal(kx1, (4, 4), dtype=jnp.float32)
    y1 = run(x_single)
    r1 = decoder_forward_ref(x_single, params, size)
    assert y1.shape == (1, size[0], size[1]), y1.shape
    assert jnp.allclose(y1, r1, atol=ATOL, rtol=RTOL), "single-sample mismatch"

    # (2) Batched path: (B, 16) rows, single (or megacore-split) large tile.
    B = 512
    x_batch = jax.random.normal(kx2, (B, _IN_DIM), dtype=jnp.float32)
    y2 = run(x_batch)
    r2 = decoder_forward_ref(x_batch, params, size)
    assert y2.shape == (B, size[0], size[1]), y2.shape
    assert jnp.allclose(y2, r2, atol=ATOL, rtol=RTOL), "batched mismatch"

    # (3) Odd batch with a small TM cap: exercises the multi-tile grid and the
    #     minimal-padding tile selection (tm_eff = 88, grid = 3).
    B3 = 264
    x_odd = jax.random.normal(kx3, (B3, _IN_DIM), dtype=jnp.float32)
    y3 = run(x_odd, tm=128)
    r3 = decoder_forward_ref(x_odd, params, size)
    assert y3.shape == (B3, size[0], size[1]), y3.shape
    assert jnp.allclose(y3, r3, atol=ATOL, rtol=RTOL), "odd-batch mismatch"

    print("KERNEL_OK")
</pallas_src>

<mosaic_0001>
module attributes {stable_mosaic.version = 11 : i64} {
  func.func @decoder_kernel(%arg0: i32, %arg1: memref<8x16xbf16, #tpu.memory_space<vmem>>, %arg2: memref<8x512xf32, #tpu.memory_space<vmem>>, %arg3: memref<16x128xbf16, #tpu.memory_space<vmem>>, %arg4: memref<128x128xbf16, #tpu.memory_space<vmem>>, %arg5: memref<128x128xbf16, #tpu.memory_space<vmem>>, %arg6: memref<128x256xbf16, #tpu.memory_space<vmem>>, %arg7: memref<256x512xbf16, #tpu.memory_space<vmem>>, %arg8: memref<512x256xbf16, #tpu.memory_space<vmem>>, %arg9: memref<8x256xf32, #tpu.memory_space<vmem>>) attributes {dimension_semantics = [#tpu.dimension_semantics<parallel>], iteration_bounds = array<i64: 1>, scalar_prefetch = 0 : i64, scratch_operands = 0 : i64, tpu.core_type = #tpu.core_type<tc>, window_params = [{transform_indices = @transform_0, window_bounds = array<i64: 8, 16>}, {pipeline_mode = #tpu.pipeline_mode<synchronous>, transform_indices = @transform_1, window_bounds = array<i64: 8, 512>}, {pipeline_mode = #tpu.pipeline_mode<synchronous>, transform_indices = @transform_2, window_bounds = array<i64: 16, 128>}, {pipeline_mode = #tpu.pipeline_mode<synchronous>, transform_indices = @transform_3, window_bounds = array<i64: 128, 128>}, {pipeline_mode = #tpu.pipeline_mode<synchronous>, transform_indices = @transform_4, window_bounds = array<i64: 128, 128>}, {pipeline_mode = #tpu.pipeline_mode<synchronous>, transform_indices = @transform_5, window_bounds = array<i64: 128, 256>}, {pipeline_mode = #tpu.pipeline_mode<synchronous>, transform_indices = @transform_6, window_bounds = array<i64: 256, 512>}, {pipeline_mode = #tpu.pipeline_mode<synchronous>, transform_indices = @transform_7, window_bounds = array<i64: 512, 256>}, {transform_indices = @transform_8, window_bounds = array<i64: 8, 256>}]} {
    %c0 = arith.constant 0 : index
    %c0_0 = arith.constant 0 : index
    %0 = vector.load %arg1[%c0, %c0_0] : memref<8x16xbf16, #tpu.memory_space<vmem>>, vector<8x16xbf16>
    %c0_1 = arith.constant 0 : index
    %c0_2 = arith.constant 0 : index
    %1 = vector.load %arg3[%c0_1, %c0_2] : memref<16x128xbf16, #tpu.memory_space<vmem>>, vector<16x128xbf16>
    %cst = arith.constant dense<0.000000e+00> : vector<8x128xf32>
    %2 = tpu.matmul %0, %1, %cst {dimension_numbers = #tpu.dot_dimension_numbers<[1], [0], [0], [1], [0, 0, 1, 1], [], []>} : vector<8x16xbf16>, vector<16x128xbf16>, vector<8x128xf32> -> vector<8x128xf32>
    %3 = arith.truncf %2 : vector<8x128xf32> to vector<8x128xbf16>
    %c0_3 = arith.constant 0 : index
    %c0_4 = arith.constant 0 : index
    %4 = vector.load %arg2[%c0_3, %c0_4] : memref<8x512xf32, #tpu.memory_space<vmem>>, vector<1x128xf32>
    %5 = arith.truncf %4 : vector<1x128xf32> to vector<1x128xbf16>
    %6 = vector.broadcast %5 : vector<1x128xbf16> to vector<8x128xbf16>
    %7 = arith.addf %3, %6 : vector<8x128xbf16>
    %cst_5 = arith.constant 0.000000e+00 : bf16
    %8 = vector.broadcast %cst_5 : bf16 to vector<8x128xbf16>
    %9 = arith.cmpf ogt, %7, %8 : vector<8x128xbf16>
    %cst_6 = arith.constant 1.000980e-02 : bf16
    %10 = vector.broadcast %cst_6 : bf16 to vector<8x128xbf16>
    %11 = arith.mulf %10, %7 : vector<8x128xbf16>
    %12 = arith.select %9, %7, %11 : vector<8x128xi1>, vector<8x128xbf16>
    %c0_7 = arith.constant 0 : index
    %c0_8 = arith.constant 0 : index
    %13 = vector.load %arg4[%c0_7, %c0_8] : memref<128x128xbf16, #tpu.memory_space<vmem>>, vector<128x128xbf16>
    %cst_9 = arith.constant dense<0.000000e+00> : vector<8x128xf32>
    %14 = tpu.matmul %12, %13, %cst_9 {dimension_numbers = #tpu.dot_dimension_numbers<[1], [0], [0], [1], [0, 0, 1, 1], [], []>} : vector<8x128xbf16>, vector<128x128xbf16>, vector<8x128xf32> -> vector<8x128xf32>
    %15 = arith.truncf %14 : vector<8x128xf32> to vector<8x128xbf16>
    %cst_10 = arith.constant 0.000000e+00 : bf16
    %16 = vector.broadcast %cst_10 : bf16 to vector<8x128xbf16>
    %17 = arith.cmpf ogt, %15, %16 : vector<8x128xbf16>
    %cst_11 = arith.constant 1.000980e-02 : bf16
    %18 = vector.broadcast %cst_11 : bf16 to vector<8x128xbf16>
    %19 = arith.mulf %18, %15 : vector<8x128xbf16>
    %20 = arith.select %17, %15, %19 : vector<8x128xi1>, vector<8x128xbf16>
    %c0_12 = arith.constant 0 : index
    %c0_13 = arith.constant 0 : index
    %21 = vector.load %arg5[%c0_12, %c0_13] : memref<128x128xbf16, #tpu.memory_space<vmem>>, vector<128x128xbf16>
    %cst_14 = arith.constant dense<0.000000e+00> : vector<8x128xf32>
    %22 = tpu.matmul %20, %21, %cst_14 {dimension_numbers = #tpu.dot_dimension_numbers<[1], [0], [0], [1], [0, 0, 1, 1], [], []>} : vector<8x128xbf16>, vector<128x128xbf16>, vector<8x128xf32> -> vector<8x128xf32>
    %23 = arith.truncf %22 : vector<8x128xf32> to vector<8x128xbf16>
    %cst_15 = arith.constant 0.000000e+00 : bf16
    %24 = vector.broadcast %cst_15 : bf16 to vector<8x128xbf16>
    %25 = arith.cmpf ogt, %23, %24 : vector<8x128xbf16>
    %cst_16 = arith.constant 1.000980e-02 : bf16
    %26 = vector.broadcast %cst_16 : bf16 to vector<8x128xbf16>
    %27 = arith.mulf %26, %23 : vector<8x128xbf16>
    %28 = arith.select %25, %23, %27 : vector<8x128xi1>, vector<8x128xbf16>
    %c0_17 = arith.constant 0 : index
    %c0_18 = arith.constant 0 : index
    %29 = vector.load %arg6[%c0_17, %c0_18] : memref<128x256xbf16, #tpu.memory_space<vmem>>, vector<128x256xbf16>
    %cst_19 = arith.constant dense<0.000000e+00> : vector<8x256xf32>
    %30 = tpu.matmul %28, %29, %cst_19 {dimension_numbers = #tpu.dot_dimension_numbers<[1], [0], [0], [1], [0, 0, 1, 1], [], []>} : vector<8x128xbf16>, vector<128x256xbf16>, vector<8x256xf32> -> vector<8x256xf32>
    %31 = arith.truncf %30 : vector<8x256xf32> to vector<8x256xbf16>
    %c3 = arith.constant 3 : index
    %c0_20 = arith.constant 0 : index
    %32 = vector.load %arg2[%c3, %c0_20] : memref<8x512xf32, #tpu.memory_space<vmem>>, vector<1x256xf32>
    %33 = arith.truncf %32 : vector<1x256xf32> to vector<1x256xbf16>
    %34 = vector.broadcast %33 : vector<1x256xbf16> to vector<8x256xbf16>
    %35 = arith.addf %31, %34 : vector<8x256xbf16>
    %cst_21 = arith.constant 0.000000e+00 : bf16
    %36 = vector.broadcast %cst_21 : bf16 to vector<8x256xbf16>
    %37 = arith.cmpf ogt, %35, %36 : vector<8x256xbf16>
    %cst_22 = arith.constant 1.000980e-02 : bf16
    %38 = vector.broadcast %cst_22 : bf16 to vector<8x256xbf16>
    %39 = arith.mulf %38, %35 : vector<8x256xbf16>
    %40 = arith.select %37, %35, %39 : vector<8x256xi1>, vector<8x256xbf16>
    %c0_23 = arith.constant 0 : index
    %c0_24 = arith.constant 0 : index
    %41 = vector.load %arg7[%c0_23, %c0_24] : memref<256x512xbf16, #tpu.memory_space<vmem>>, vector<256x512xbf16>
    %cst_25 = arith.constant dense<0.000000e+00> : vector<8x512xf32>
    %42 = tpu.matmul %40, %41, %cst_25 {dimension_numbers = #tpu.dot_dimension_numbers<[1], [0], [0], [1], [0, 0, 1, 1], [], []>} : vector<8x256xbf16>, vector<256x512xbf16>, vector<8x512xf32> -> vector<8x512xf32>
    %43 = arith.truncf %42 : vector<8x512xf32> to vector<8x512xbf16>
    %c4 = arith.constant 4 : index
    %c0_26 = arith.constant 0 : index
    %44 = vector.load %arg2[%c4, %c0_26] : memref<8x512xf32, #tpu.memory_space<vmem>>, vector<1x512xf32>
    %45 = arith.truncf %44 : vector<1x512xf32> to vector<1x512xbf16>
    %46 = vector.broadcast %45 : vector<1x512xbf16> to vector<8x512xbf16>
    %47 = arith.addf %43, %46 : vector<8x512xbf16>
    %cst_27 = arith.constant 0.000000e+00 : bf16
    %48 = vector.broadcast %cst_27 : bf16 to vector<8x512xbf16>
    %49 = arith.cmpf ogt, %47, %48 : vector<8x512xbf16>
    %cst_28 = arith.constant 1.000980e-02 : bf16
    %50 = vector.broadcast %cst_28 : bf16 to vector<8x512xbf16>
    %51 = arith.mulf %50, %47 : vector<8x512xbf16>
    %52 = arith.select %49, %47, %51 : vector<8x512xi1>, vector<8x512xbf16>
    %c0_29 = arith.constant 0 : index
    %c0_30 = arith.constant 0 : index
    %53 = vector.load %arg8[%c0_29, %c0_30] : memref<512x256xbf16, #tpu.memory_space<vmem>>, vector<512x256xbf16>
    %cst_31 = arith.constant dense<0.000000e+00> : vector<8x256xf32>
    %54 = tpu.matmul %52, %53, %cst_31 {dimension_numbers = #tpu.dot_dimension_numbers<[1], [0], [0], [1], [0, 0, 1, 1], [], []>} : vector<8x512xbf16>, vector<512x256xbf16>, vector<8x256xf32> -> vector<8x256xf32>
    %c5 = arith.constant 5 : index
    %c0_32 = arith.constant 0 : index
    %55 = vector.load %arg2[%c5, %c0_32] : memref<8x512xf32, #tpu.memory_space<vmem>>, vector<1x256xf32>
    %56 = vector.broadcast %55 : vector<1x256xf32> to vector<8x256xf32>
    %57 = arith.addf %54, %56 : vector<8x256xf32>
    %c0_33 = arith.constant 0 : index
    %c0_34 = arith.constant 0 : index
    %58 = vector.load %arg9[%c0_33, %c0_34] : memref<8x256xf32, #tpu.memory_space<vmem>>, vector<8x256xf32>
    tpu.vector_store %arg9[%c0_33, %c0_34], %57 {strides = array<i32>} : memref<8x256xf32, #tpu.memory_space<vmem>>, vector<8x256xf32>,
    return
  }
  func.func @transform_0(%arg0: i32) -> (i32, i32) {
    %c0_i32 = arith.constant 0 : i32
    %c0_i32_0 = arith.constant 0 : i32
    return %arg0, %c0_i32 : i32, i32
  }
  func.func @transform_1(%arg0: i32) -> (i32, i32) {
    %c0_i32 = arith.constant 0 : i32
    %c0_i32_0 = arith.constant 0 : i32
    %c0_i32_1 = arith.constant 0 : i32
    return %c0_i32, %c0_i32_0 : i32, i32
  }
  func.func @transform_2(%arg0: i32) -> (i32, i32) {
    %c0_i32 = arith.constant 0 : i32
    %c0_i32_0 = arith.constant 0 : i32
    %c0_i32_1 = arith.constant 0 : i32
    return %c0_i32, %c0_i32_0 : i32, i32
  }
  func.func @transform_3(%arg0: i32) -> (i32, i32) {
    %c0_i32 = arith.constant 0 : i32
    %c0_i32_0 = arith.constant 0 : i32
    %c0_i32_1 = arith.constant 0 : i32
    return %c0_i32, %c0_i32_0 : i32, i32
  }
  func.func @transform_4(%arg0: i32) -> (i32, i32) {
    %c0_i32 = arith.constant 0 : i32
    %c0_i32_0 = arith.constant 0 : i32
    %c0_i32_1 = arith.constant 0 : i32
    return %c0_i32, %c0_i32_0 : i32, i32
  }
  func.func @transform_5(%arg0: i32) -> (i32, i32) {
    %c0_i32 = arith.constant 0 : i32
    %c0_i32_0 = arith.constant 0 : i32
    %c0_i32_1 = arith.constant 0 : i32
    return %c0_i32, %c0_i32_0 : i32, i32
  }
  func.func @transform_6(%arg0: i32) -> (i32, i32) {
    %c0_i32 = arith.constant 0 : i32
    %c0_i32_0 = arith.constant 0 : i32
    %c0_i32_1 = arith.constant 0 : i32
    return %c0_i32, %c0_i32_0 : i32, i32
  }
  func.func @transform_7(%arg0: i32) -> (i32, i32) {
    %c0_i32 = arith.constant 0 : i32
    %c0_i32_0 = arith.constant 0 : i32
    %c0_i32_1 = arith.constant 0 : i32
    return %c0_i32, %c0_i32_0 : i32, i32
  }
  func.func @transform_8(%arg0: i32) -> (i32, i32) {
    %c0_i32 = arith.constant 0 : i32
    %c0_i32_0 = arith.constant 0 : i32
    return %arg0, %c0_i32 : i32, i32
  }
}

</mosaic_0001>

<llo_original>
// kernel: decoder_forward.1
$region0: #{decoder_forward.1}
  #allocation0 [shape = 'u32[]', space=smem, size = 0x4, offset = 0x4, fixed_abs, tag = 'smem constant byte address 0x4 - core index']
  #allocation1 [shape = 'u32[144,128]{1,0:T(1,128)}', space=vmem, size = 0x12000, scoped, tag = 'internal scratch']
  %s0 = inlined_call_operand.vmem [shape: bf16[8,16], index: 0, kind: input, shape index: {}]
  %s1 = inlined_call_operand.hbm [shape: f32[8,512], index: 1, kind: input, shape index: {}]
  %s2 = inlined_call_operand.vmem [shape: bf16[16,128], index: 2, kind: input, shape index: {}]
  %s3 = inlined_call_operand.hbm [shape: bf16[128,128], index: 3, kind: input, shape index: {}]
  %s4 = inlined_call_operand.hbm [shape: bf16[128,128], index: 4, kind: input, shape index: {}]
  %s5 = inlined_call_operand.hbm [shape: bf16[128,256], index: 5, kind: input, shape index: {}]
  %s6 = inlined_call_operand.hbm [shape: bf16[256,512], index: 6, kind: input, shape index: {}]
  %s7 = inlined_call_operand.hbm [shape: bf16[512,256], index: 7, kind: input, shape index: {}]
  %s8 = inlined_call_operand.vmem [shape: f32[8,256], index: 8, kind: output, shape index: {}]
  %s9 = sld [smem:[#allocation0]]
  $region66: #{decoder_forward.1} parent=0
    _
  %s11 = ssub.s32 1, %s9
  %s12 = scalar_select 0, %s11, %s9
  $region1: #{decoder_forward.1} parent=0
    #allocation2 [shape = 'u8[16384]{0}', space=vmem, size = 0x4000, scoped, tag = 'input window, operand 1, single buffered']
    #allocation3 [shape = 's32[1]{0}', space=sflag, size = 0x4, scoped, tag = 'scoped memory for decoder_forward.1']
    #allocation4 [shape = 'u8[32768]{0}', space=vmem, size = 0x8000, scoped, tag = 'input window, operand 3, single buffered']
    #allocation5 [shape = 's32[1]{0}', space=sflag, size = 0x4, scoped, tag = 'scoped memory for decoder_forward.1']
    #allocation6 [shape = 'u8[32768]{0}', space=vmem, size = 0x8000, scoped, tag = 'input window, operand 4, single buffered']
    #allocation7 [shape = 'u8[65536]{0}', space=vmem, size = 0x10000, scoped, tag = 'input window, operand 5, single buffered']
    #allocation8 [shape = 's32[1]{0}', space=sflag, size = 0x4, scoped, tag = 'scoped memory for decoder_forward.1']
    #allocation9 [shape = 'u8[262144]{0}', space=vmem, size = 0x40000, scoped, tag = 'input window, operand 6, single buffered']
    #allocation10 [shape = 'u8[262144]{0}', space=vmem, size = 0x40000, scoped, tag = 'input window, operand 7, single buffered']
    #allocation11 [shape = 's32[1]{0}', space=sflag, size = 0x4, scoped, tag = 'scoped memory for decoder_forward.1']
    %13 = vsyncpa [#allocation3], 0
    %14 = vsyncpa [#allocation5], 0
    %15 = vsyncpa [#allocation8], 0
    %16 = vsyncpa [#allocation11], 0
    // Predicated region
    $region2: #{decoder_forward.1} parent=1 // pred_check
      _
    $region3: #{decoder_forward.1} parent=1 // pred_check_branch
      %18 = sbr.rel (0) target = $region5
    $region4: #{decoder_forward.1} parent=1 // pred_region
      _
    $region5: #{decoder_forward.1} parent=1 // pred_fallthru
      _
    // Predicated region
    $region6: #{decoder_forward.1} parent=1 // pred_check
      _
    $region7: #{decoder_forward.1} parent=1 // pred_check_branch
      %20 = sbr.rel (0) target = $region9
    $region8: #{decoder_forward.1} parent=1 // pred_region
      %s22 = ssub.s32 512, 512
      %23 = vsyncadd [#allocation3], %s22
      %s25 = sshll.u32 [#allocation2], 4
      %s26 = int_to_ptr.vmem [resolvable:$true] %s25
      %28 = dma.hbm_to_vmem [thread:$0]  %s1, 512, %s26, [#allocation3]
    $region9: #{decoder_forward.1} parent=1 // pred_fallthru
      _
    // Predicated region
    $region10: #{decoder_forward.1} parent=1 // pred_check
      _
    $region11: #{decoder_forward.1} parent=1 // pred_check_branch
      %30 = sbr.rel (0) target = $region13
    $region12: #{decoder_forward.1} parent=1 // pred_region
      _
    $region13: #{decoder_forward.1} parent=1 // pred_fallthru
      _
    // Predicated region
    $region14: #{decoder_forward.1} parent=1 // pred_check
      _
    $region15: #{decoder_forward.1} parent=1 // pred_check_branch
      %32 = sbr.rel (0) target = $region17
    $region16: #{decoder_forward.1} parent=1 // pred_region
      %s34 = ssub.s32 1024, 1024
      %35 = vsyncadd [#allocation5], %s34
      %s36 = sshll.u32 [#allocation4], 4
      %s37 = int_to_ptr.vmem [resolvable:$true] %s36
      %42 = dma.hbm_to_vmem [thread:$0]  %s3, 1024, %s37, [#allocation5], 64, 64, 4
    $region17: #{decoder_forward.1} parent=1 // pred_fallthru
      _
    // Predicated region
    $region18: #{decoder_forward.1} parent=1 // pred_check
      _
    $region19: #{decoder_forward.1} parent=1 // pred_check_branch
      %44 = sbr.rel (0) target = $region21
    $region20: #{decoder_forward.1} parent=1 // pred_region
      %s46 = ssub.s32 1024, 1024
      %47 = vsyncadd [#allocation5], %s46
      %s48 = sshll.u32 [#allocation6], 4
      %s49 = int_to_ptr.vmem [resolvable:$true] %s48
      %54 = dma.hbm_to_vmem [thread:$0]  %s4, 1024, %s49, [#allocation5], 64, 64, 4
    $region21: #{decoder_forward.1} parent=1 // pred_fallthru
      _
    // Predicated region
    $region22: #{decoder_forward.1} parent=1 // pred_check
      _
    $region23: #{decoder_forward.1} parent=1 // pred_check_branch
      %56 = sbr.rel (0) target = $region25
    $region24: #{decoder_forward.1} parent=1 // pred_region
      %s58 = ssub.s32 2048, 2048
      %59 = vsyncadd [#allocation8], %s58
      %s60 = sshll.u32 [#allocation7], 4
      %s61 = int_to_ptr.vmem [resolvable:$true] %s60
      %66 = dma.hbm_to_vmem [thread:$0]  %s5, 2048, %s61, [#allocation8], 128, 128, 8
    $region25: #{decoder_forward.1} parent=1 // pred_fallthru
      _
    // Predicated region
    $region26: #{decoder_forward.1} parent=1 // pred_check
      _
    $region27: #{decoder_forward.1} parent=1 // pred_check_branch
      %68 = sbr.rel (0) target = $region29
    $region28: #{decoder_forward.1} parent=1 // pred_region
      %s70 = ssub.s32 8192, 8192
      %71 = vsyncadd [#allocation8], %s70
      %s72 = sshll.u32 [#allocation9], 4
      %s73 = int_to_ptr.vmem [resolvable:$true] %s72
      %78 = dma.hbm_to_vmem [thread:$0]  %s6, 8192, %s73, [#allocation8], 256, 256, 16
    $region29: #{decoder_forward.1} parent=1 // pred_fallthru
      _
    // Predicated region
    $region30: #{decoder_forward.1} parent=1 // pred_check
      _
    $region31: #{decoder_forward.1} parent=1 // pred_check_branch
      %80 = sbr.rel (0) target = $region33
    $region32: #{decoder_forward.1} parent=1 // pred_region
      %s82 = ssub.s32 8192, 8192
      %83 = vsyncadd [#allocation11], %s82
      %s84 = sshll.u32 [#allocation10], 4
      %s85 = int_to_ptr.vmem [resolvable:$true] %s84
      %90 = dma.hbm_to_vmem [thread:$0]  %s7, 8192, %s85, [#allocation11], 128, 128, 8
    $region33: #{decoder_forward.1} parent=1 // pred_fallthru
      _
    // Predicated region
    $region34: #{decoder_forward.1} parent=1 // pred_check
      _
    $region35: #{decoder_forward.1} parent=1 // pred_check_branch
      %92 = sbr.rel (0) target = $region37
    $region36: #{decoder_forward.1} parent=1 // pred_region
      %93 = dma.done [#allocation3], 512
    $region37: #{decoder_forward.1} parent=1 // pred_fallthru
      _
    // Predicated region
    $region38: #{decoder_forward.1} parent=1 // pred_check
      _
    $region39: #{decoder_forward.1} parent=1 // pred_check_branch
      %95 = sbr.rel (0) target = $region41
    $region40: #{decoder_forward.1} parent=1 // pred_region
      %96 = dma.done [#allocation5], 1024
    $region41: #{decoder_forward.1} parent=1 // pred_fallthru
      _
    // Predicated region
    $region42: #{decoder_forward.1} parent=1 // pred_check
      _
    $region43: #{decoder_forward.1} parent=1 // pred_check_branch
      %98 = sbr.rel (0) target = $region45
    $region44: #{decoder_forward.1} parent=1 // pred_region
      %99 = dma.done [#allocation5], 1024
    $region45: #{decoder_forward.1} parent=1 // pred_fallthru
      _
    // Predicated region
    $region46: #{decoder_forward.1} parent=1 // pred_check
      _
    $region47: #{decoder_forward.1} parent=1 // pred_check_branch
      %101 = sbr.rel (0) target = $region49
    $region48: #{decoder_forward.1} parent=1 // pred_region
      %102 = dma.done [#allocation8], 2048
    $region49: #{decoder_forward.1} parent=1 // pred_fallthru
      _
    // Predicated region
    $region50: #{decoder_forward.1} parent=1 // pred_check
      _
    $region51: #{decoder_forward.1} parent=1 // pred_check_branch
      %104 = sbr.rel (0) target = $region53
    $region52: #{decoder_forward.1} parent=1 // pred_region
      %105 = dma.done [#allocation8], 8192
    $region53: #{decoder_forward.1} parent=1 // pred_fallthru
      _
    // Predicated region
    $region54: #{decoder_forward.1} parent=1 // pred_check
      _
    $region55: #{decoder_forward.1} parent=1 // pred_check_branch
      %107 = sbr.rel (0) target = $region57
    $region56: #{decoder_forward.1} parent=1 // pred_region
      %108 = dma.done [#allocation11], 8192
    $region57: #{decoder_forward.1} parent=1 // pred_fallthru
      _
    %v111 = vld [vmem:[%s0] sm:$0xf]
    %v112 = vld [vmem:[%s2] sm:$0xf]
    %v113 = vld [vmem:[%s2 + $0x4] sm:$0xf]
    %v116 = vunpack.c.l.b16 %v112
    %v117 = vunpack.c.l.b16 %v113
    %v118 = vpack.c.b16 %v117, %v116
    %vm120 = vcmask 130048
    %v122 = vsel %vm120, %v111, 0
    %124 = vmatprep.subr.bf16.mxu0 0
    %125 = vmatpush1.bf16.msra.mxu0 0
    %126 = vmatprep.subr.bf16.mxu0 0
    %127 = vmatpush1.bf16.msra.mxu0 0
    %128 = vmatprep.subr.bf16.mxu0 0
    %129 = vmatpush1.bf16.msra.mxu0 0
    %130 = vmatprep.subr.bf16.mxu0 0
    %131 = vmatpush1.bf16.msra.mxu0 0
    %132 = vmatprep.subr.bf16.mxu0 0
    %133 = vmatpush1.bf16.msra.mxu0 0
    %134 = vmatprep.subr.bf16.mxu0 0
    %135 = vmatpush1.bf16.msra.mxu0 0
    %136 = vmatprep.subr.bf16.mxu0 0
    %137 = vmatpush1.bf16.msra.mxu0 0
    %138 = vmatprep.subr.bf16.mxu0 0
    %139 = vmatpush1.bf16.msra.mxu0 %v118
    %140 = vmatprep.subr.bf16.mxu0 0
    %141 = vmatpush2.bf16.msra.mxu0 0
    %142 = vmatprep.subr.bf16.mxu0 0
    %143 = vmatpush2.bf16.msra.mxu0 0
    %144 = vmatprep.subr.bf16.mxu0 0
    %145 = vmatpush2.bf16.msra.mxu0 0
    %146 = vmatprep.subr.bf16.mxu0 0
    %147 = vmatpush2.bf16.msra.mxu0 0
    %148 = vmatprep.subr.bf16.mxu0 0
    %149 = vmatpush2.bf16.msra.mxu0 0
    %150 = vmatprep.subr.bf16.mxu0 0
    %151 = vmatpush2.bf16.msra.mxu0 0
    %152 = vmatprep.subr.bf16.mxu0 0
    %153 = vmatpush2.bf16.msra.mxu0 0
    %154 = vmatprep.subr.bf16.mxu0 0
    %155 = vmatpush2.bf16.msra.mxu0 0
    %156 = vmatprep.mubr.bf16.mxu0 0
    %157 = vmatmul.mubr.bf16.gmra.mxu0 %v122
    %v158 = vpop.f32.mrf.mxu0
    %v159 = vadd.f32 0.0, %v158
    %v160 = vpop.f32.mrf.mxu0
    %v161 = vpop.f32.mrf.mxu0
    %v162 = vpop.f32.mrf.mxu0
    %163 = vdwg.mxu0
    %v164 = vpack.c.bf16 %v159, %v159
    %v165 = vld [vmem:[#allocation2] ss:$0 sm:$0xff]
    %v166 = vpack.c.bf16 %v165, %v165
    %v167 = vadd.bf16 %v164, %v166
    %vm168 = vcmp.gt.bf16.partialorder %v167, 0
    %v169 = vmul.bf16 %v167, 1009007652
    %v170 = vsel %vm168, %v167, %v169
    %v171 = vld [vmem:[#allocation4] sm:$0xf]
    %v172 = vld [vmem:[#allocation4 + $0x4] sm:$0xf]
    %v173 = vld [vmem:[#allocation4 + $0x8] sm:$0xf]
    %v174 = vld [vmem:[#allocation4 + $0xc] sm:$0xf]
    %v175 = vld [vmem:[#allocation4 + $0x10] sm:$0xf]
    %v176 = vld [vmem:[#allocation4 + $0x14] sm:$0xf]
    %v177 = vld [vmem:[#allocation4 + $0x18] sm:$0xf]
    %v178 = vld [vmem:[#allocation4 + $0x1c] sm:$0xf]
    %v179 = vld [vmem:[#allocation4 + $0x20] sm:$0xf]
    %v180 = vld [vmem:[#allocation4 + $0x24] sm:$0xf]
    %v181 = vld [vmem:[#allocation4 + $0x28] sm:$0xf]
    %v182 = vld [vmem:[#allocation4 + $0x2c] sm:$0xf]
    %v183 = vld [vmem:[#allocation4 + $0x30] sm:$0xf]
    %v184 = vld [vmem:[#allocation4 + $0x34] sm:$0xf]
    %v185 = vld [vmem:[#allocation4 + $0x38] sm:$0xf]
    %v186 = vld [vmem:[#allocation4 + $0x3c] sm:$0xf]
    %v203 = vunpack.c.l.b16 %v171
    %v204 = vunpack.c.l.b16 %v172
    %v205 = vunpack.c.l.b16 %v173
    %v206 = vunpack.c.l.b16 %v174
    %v207 = vunpack.c.l.b16 %v175
    %v208 = vunpack.c.l.b16 %v176
    %v209 = vunpack.c.l.b16 %v177
    %v210 = vunpack.c.l.b16 %v178
    %v211 = vunpack.c.l.b16 %v179
    %v212 = vunpack.c.l.b16 %v180
    %v213 = vunpack.c.l.b16 %v181
    %v214 = vunpack.c.l.b16 %v182
    %v215 = vunpack.c.l.b16 %v183
    %v216 = vunpack.c.l.b16 %v184
    %v217 = vunpack.c.l.b16 %v185
    %v218 = vunpack.c.l.b16 %v186
    %v219 = vpack.c.b16 %v204, %v203
    %v220 = vpack.c.b16 %v206, %v205
    %v221 = vpack.c.b16 %v208, %v207
    %v222 = vpack.c.b16 %v210, %v209
    %v223 = vpack.c.b16 %v212, %v211
    %v224 = vpack.c.b16 %v214, %v213
    %v225 = vpack.c.b16 %v216, %v215
    %v226 = vpack.c.b16 %v218, %v217
    %235 = vmatprep.subr.bf16.mxu0 0
    %236 = vmatpush1.bf16.msra.mxu0 %v226
    %237 = vmatprep.subr.bf16.mxu0 0
    %238 = vmatpush1.bf16.msra.mxu0 %v225
    %239 = vmatprep.subr.bf16.mxu0 0
    %240 = vmatpush1.bf16.msra.mxu0 %v224
    %241 = vmatprep.subr.bf16.mxu0 0
    %242 = vmatpush1.bf16.msra.mxu0 %v223
    %243 = vmatprep.subr.bf16.mxu0 0
    %244 = vmatpush1.bf16.msra.mxu0 %v222
    %245 = vmatprep.subr.bf16.mxu0 0
    %246 = vmatpush1.bf16.msra.mxu0 %v221
    %247 = vmatprep.subr.bf16.mxu0 0
    %248 = vmatpush1.bf16.msra.mxu0 %v220
    %249 = vmatprep.subr.bf16.mxu0 0
    %250 = vmatpush1.bf16.msra.mxu0 %v219
    %251 = vmatprep.subr.bf16.mxu0 0
    %252 = vmatpush2.bf16.msra.mxu0 0
    %253 = vmatprep.subr.bf16.mxu0 0
    %254 = vmatpush2.bf16.msra.mxu0 0
    %255 = vmatprep.subr.bf16.mxu0 0
    %256 = vmatpush2.bf16.msra.mxu0 0
    %257 = vmatprep.subr.bf16.mxu0 0
    %258 = vmatpush2.bf16.msra.mxu0 0
    %259 = vmatprep.subr.bf16.mxu0 0
    %260 = vmatpush2.bf16.msra.mxu0 0
    %261 = vmatprep.subr.bf16.mxu0 0
    %262 = vmatpush2.bf16.msra.mxu0 0
    %263 = vmatprep.subr.bf16.mxu0 0
    %264 = vmatpush2.bf16.msra.mxu0 0
    %265 = vmatprep.subr.bf16.mxu0 0
    %266 = vmatpush2.bf16.msra.mxu0 0
    %267 = vmatprep.mubr.bf16.mxu0 0
    %268 = vmatmul.mubr.bf16.gmra.mxu0 %v170
    %v269 = vpop.f32.mrf.mxu0
    %v270 = vadd.f32 0.0, %v269
    %v271 = vpop.f32.mrf.mxu0
    %v272 = vpop.f32.mrf.mxu0
    %v273 = vpop.f32.mrf.mxu0
    %274 = vdwg.mxu0
    %v275 = vpack.c.bf16 %v270, %v270
    %vm276 = vcmp.gt.bf16.partialorder %v275, 0
    %v277 = vmul.bf16 %v275, 1009007652
    %v278 = vsel %vm276, %v275, %v277
    %v279 = vld [vmem:[#allocation6] sm:$0xf]
    %v280 = vld [vmem:[#allocation6 + $0x4] sm:$0xf]
    %v281 = vld [vmem:[#allocation6 + $0x8] sm:$0xf]
    %v282 = vld [vmem:[#allocation6 + $0xc] sm:$0xf]
    %v283 = vld [vmem:[#allocation6 + $0x10] sm:$0xf]
    %v284 = vld [vmem:[#allocation6 + $0x14] sm:$0xf]
    %v285 = vld [vmem:[#allocation6 + $0x18] sm:$0xf]
    %v286 = vld [vmem:[#allocation6 + $0x1c] sm:$0xf]
    %v287 = vld [vmem:[#allocation6 + $0x20] sm:$0xf]
    %v288 = vld [vmem:[#allocation6 + $0x24] sm:$0xf]
    %v289 = vld [vmem:[#allocation6 + $0x28] sm:$0xf]
    %v290 = vld [vmem:[#allocation6 + $0x2c] sm:$0xf]
    %v291 = vld [vmem:[#allocation6 + $0x30] sm:$0xf]
    %v292 = vld [vmem:[#allocation6 + $0x34] sm:$0xf]
    %v293 = vld [vmem:[#allocation6 + $0x38] sm:$0xf]
    %v294 = vld [vmem:[#allocation6 + $0x3c] sm:$0xf]
    %v311 = vunpack.c.l.b16 %v279
    %v312 = vunpack.c.l.b16 %v280
    %v313 = vunpack.c.l.b16 %v281
    %v314 = vunpack.c.l.b16 %v282
    %v315 = vunpack.c.l.b16 %v283
    %v316 = vunpack.c.l.b16 %v284
    %v317 = vunpack.c.l.b16 %v285
    %v318 = vunpack.c.l.b16 %v286
    %v319 = vunpack.c.l.b16 %v287
    %v320 = vunpack.c.l.b16 %v288
    %v321 = vunpack.c.l.b16 %v289
    %v322 = vunpack.c.l.b16 %v290
    %v323 = vunpack.c.l.b16 %v291
    %v324 = vunpack.c.l.b16 %v292
    %v325 = vunpack.c.l.b16 %v293
    %v326 = vunpack.c.l.b16 %v294
    %v327 = vpack.c.b16 %v312, %v311
    %v328 = vpack.c.b16 %v314, %v313
    %v329 = vpack.c.b16 %v316, %v315
    %v330 = vpack.c.b16 %v318, %v317
    %v331 = vpack.c.b16 %v320, %v319
    %v332 = vpack.c.b16 %v322, %v321
    %v333 = vpack.c.b16 %v324, %v323
    %v334 = vpack.c.b16 %v326, %v325
    %343 = vmatprep.subr.bf16.mxu0 0
    %344 = vmatpush1.bf16.msra.mxu0 %v334
    %345 = vmatprep.subr.bf16.mxu0 0
    %346 = vmatpush1.bf16.msra.mxu0 %v333
    %347 = vmatprep.subr.bf16.mxu0 0
    %348 = vmatpush1.bf16.msra.mxu0 %v332
    %349 = vmatprep.subr.bf16.mxu0 0
    %350 = vmatpush1.bf16.msra.mxu0 %v331
    %351 = vmatprep.subr.bf16.mxu0 0
    %352 = vmatpush1.bf16.msra.mxu0 %v330
    %353 = vmatprep.subr.bf16.mxu0 0
    %354 = vmatpush1.bf16.msra.mxu0 %v329
    %355 = vmatprep.subr.bf16.mxu0 0
    %356 = vmatpush1.bf16.msra.mxu0 %v328
    %357 = vmatprep.subr.bf16.mxu0 0
    %358 = vmatpush1.bf16.msra.mxu0 %v327
    %359 = vmatprep.subr.bf16.mxu0 0
    %360 = vmatpush2.bf16.msra.mxu0 0
    %361 = vmatprep.subr.bf16.mxu0 0
    %362 = vmatpush2.bf16.msra.mxu0 0
    %363 = vmatprep.subr.bf16.mxu0 0
    %364 = vmatpush2.bf16.msra.mxu0 0
    %365 = vmatprep.subr.bf16.mxu0 0
    %366 = vmatpush2.bf16.msra.mxu0 0
    %367 = vmatprep.subr.bf16.mxu0 0
    %368 = vmatpush2.bf16.msra.mxu0 0
    %369 = vmatprep.subr.bf16.mxu0 0
    %370 = vmatpush2.bf16.msra.mxu0 0
    %371 = vmatprep.subr.bf16.mxu0 0
    %372 = vmatpush2.bf16.msra.mxu0 0
    %373 = vmatprep.subr.bf16.mxu0 0
    %374 = vmatpush2.bf16.msra.mxu0 0
    %375 = vmatprep.mubr.bf16.mxu0 0
    %376 = vmatmul.mubr.bf16.gmra.mxu0 %v278
    %v377 = vpop.f32.mrf.mxu0
    %v378 = vadd.f32 0.0, %v377
    %v379 = vpop.f32.mrf.mxu0
    %v380 = vpop.f32.mrf.mxu0
    %v381 = vpop.f32.mrf.mxu0
    %382 = vdwg.mxu0
    %v383 = vpack.c.bf16 %v378, %v378
    %vm384 = vcmp.gt.bf16.partialorder %v383, 0
    %v385 = vmul.bf16 %v383, 1009007652
    %v386 = vsel %vm384, %v383, %v385
    %v387 = vld [vmem:[#allocation7] sm:$0xff]
    %v388 = vld [vmem:[#allocation7 + $0x8] sm:$0xff]
    %v389 = vld [vmem:[#allocation7 + $0x10] sm:$0xff]
    %v390 = vld [vmem:[#allocation7 + $0x18] sm:$0xff]
    %v391 = vld [vmem:[#allocation7 + $0x20] sm:$0xff]
    %v392 = vld [vmem:[#allocation7 + $0x28] sm:$0xff]
    %v393 = vld [vmem:[#allocation7 + $0x30] sm:$0xff]
    %v394 = vld [vmem:[#allocation7 + $0x38] sm:$0xff]
    %v395 = vld [vmem:[#allocation7 + $0x40] sm:$0xff]
    %v396 = vld [vmem:[#allocation7 + $0x48] sm:$0xff]
    %v397 = vld [vmem:[#allocation7 + $0x50] sm:$0xff]
    %v398 = vld [vmem:[#allocation7 + $0x58] sm:$0xff]
    %v399 = vld [vmem:[#allocation7 + $0x60] sm:$0xff]
    %v400 = vld [vmem:[#allocation7 + $0x68] sm:$0xff]
    %v401 = vld [vmem:[#allocation7 + $0x70] sm:$0xff]
    %v402 = vld [vmem:[#allocation7 + $0x78] sm:$0xff]
    %v419 = vunpack.c.l.b16 %v387
    %v420 = vunpack.c.h.b16 %v387
    %v421 = vunpack.c.l.b16 %v388
    %v422 = vunpack.c.h.b16 %v388
    %v423 = vunpack.c.l.b16 %v389
    %v424 = vunpack.c.h.b16 %v389
    %v425 = vunpack.c.l.b16 %v390
    %v426 = vunpack.c.h.b16 %v390
    %v427 = vunpack.c.l.b16 %v391
    %v428 = vunpack.c.h.b16 %v391
    %v429 = vunpack.c.l.b16 %v392
    %v430 = vunpack.c.h.b16 %v392
    %v431 = vunpack.c.l.b16 %v393
    %v432 = vunpack.c.h.b16 %v393
    %v433 = vunpack.c.l.b16 %v394
    %v434 = vunpack.c.h.b16 %v394
    %v435 = vunpack.c.l.b16 %v395
    %v436 = vunpack.c.h.b16 %v395
    %v437 = vunpack.c.l.b16 %v396
    %v438 = vunpack.c.h.b16 %v396
    %v439 = vunpack.c.l.b16 %v397
    %v440 = vunpack.c.h.b16 %v397
    %v441 = vunpack.c.l.b16 %v398
    %v442 = vunpack.c.h.b16 %v398
    %v443 = vunpack.c.l.b16 %v399
    %v444 = vunpack.c.h.b16 %v399
    %v445 = vunpack.c.l.b16 %v400
    %v446 = vunpack.c.h.b16 %v400
    %v447 = vunpack.c.l.b16 %v401
    %v448 = vunpack.c.h.b16 %v401
    %v449 = vunpack.c.l.b16 %v402
    %v450 = vunpack.c.h.b16 %v402
    %v451 = vpack.c.b16 %v421, %v419
    %v452 = vpack.c.b16 %v422, %v420
    %v453 = vpack.c.b16 %v425, %v423
    %v454 = vpack.c.b16 %v426, %v424
    %v455 = vpack.c.b16 %v429, %v427
    %v456 = vpack.c.b16 %v430, %v428
    %v457 = vpack.c.b16 %v433, %v431
    %v458 = vpack.c.b16 %v434, %v432
    %v459 = vpack.c.b16 %v437, %v435
    %v460 = vpack.c.b16 %v438, %v436
    %v461 = vpack.c.b16 %v441, %v439
    %v462 = vpack.c.b16 %v442, %v440
    %v463 = vpack.c.b16 %v445, %v443
    %v464 = vpack.c.b16 %v446, %v444
    %v465 = vpack.c.b16 %v449, %v447
    %v466 = vpack.c.b16 %v450, %v448
    %483 = vmatprep.subr.bf16.mxu0 %v466
    %484 = vmatpush1.bf16.msra.mxu0 %v465
    %485 = vmatprep.subr.bf16.mxu0 %v464
    %486 = vmatpush1.bf16.msra.mxu0 %v463
    %487 = vmatprep.subr.bf16.mxu0 %v462
    %488 = vmatpush1.bf16.msra.mxu0 %v461
    %489 = vmatprep.subr.bf16.mxu0 %v460
    %490 = vmatpush1.bf16.msra.mxu0 %v459
    %491 = vmatprep.subr.bf16.mxu0 %v458
    %492 = vmatpush1.bf16.msra.mxu0 %v457
    %493 = vmatprep.subr.bf16.mxu0 %v456
    %494 = vmatpush1.bf16.msra.mxu0 %v455
    %495 = vmatprep.subr.bf16.mxu0 %v454
    %496 = vmatpush1.bf16.msra.mxu0 %v453
    %497 = vmatprep.subr.bf16.mxu0 %v452
    %498 = vmatpush1.bf16.msra.mxu0 %v451
    %499 = vmatprep.subr.bf16.mxu0 0
    %500 = vmatpush2.bf16.msra.mxu0 0
    %501 = vmatprep.subr.bf16.mxu0 0
    %502 = vmatpush2.bf16.msra.mxu0 0
    %503 = vmatprep.subr.bf16.mxu0 0
    %504 = vmatpush2.bf16.msra.mxu0 0
    %505 = vmatprep.subr.bf16.mxu0 0
    %506 = vmatpush2.bf16.msra.mxu0 0
    %507 = vmatprep.subr.bf16.mxu0 0
    %508 = vmatpush2.bf16.msra.mxu0 0
    %509 = vmatprep.subr.bf16.mxu0 0
    %510 = vmatpush2.bf16.msra.mxu0 0
    %511 = vmatprep.subr.bf16.mxu0 0
    %512 = vmatpush2.bf16.msra.mxu0 0
    %513 = vmatprep.subr.bf16.mxu0 0
    %514 = vmatpush2.bf16.msra.mxu0 0
    %515 = vmatprep.mubr.bf16.mxu0 0
    %516 = vmatmul.mubr.bf16.gmra.mxu0 %v386
    %v517 = vpop.f32.mrf.mxu0
    %v518 = vadd.f32 0.0, %v517
    %v519 = vpop.f32.mrf.mxu0
    %v520 = vadd.f32 0.0, %v519
    %v521 = vpop.f32.mrf.mxu0
    %v522 = vpop.f32.mrf.mxu0
    %523 = vdwg.mxu0
    %v524 = vpack.c.bf16 %v518, %v518
    %v525 = vpack.c.bf16 %v520, %v520
    %s526 = scalar_lea.vmem [#allocation2], 3
    %v527 = vld [vmem:[%s526] ss:$8 sm:$0x3]
    %v529 = vlaneseq
    %v530 = vshrl.u32 %v529, 7
    %v531 = vsub.s32 0, %v530
    %v532 = vrot.slane %v527, %v531
    %v533 = vlaneseq
    %v534 = vshrl.u32 %v533, 7
    %v535 = vsub.s32 1, %v534
    %v536 = vrot.slane %v527, %v535
    %v539 = vpack.c.bf16 %v532, %v532
    %v540 = vpack.c.bf16 %v536, %v536
    %v542 = vpack.i.b16 %v539, %v539
    %v544 = vlaneseq
    %v545 = vshrl.u32 %v544, 7
    %v546 = vsub.s32 0, %v545
    %v547 = vrot.slane %v542, %v546
    %v549 = vpack.i.b16 %v540, %v540
    %v551 = vlaneseq
    %v552 = vshrl.u32 %v551, 7
    %v553 = vsub.s32 0, %v552
    %v554 = vrot.slane %v549, %v553
    %v555 = vadd.bf16 %v524, %v547
    %v556 = vadd.bf16 %v525, %v554
    %vm557 = vcmp.gt.bf16.partialorder %v555, 0
    %vm558 = vcmp.gt.bf16.partialorder %v556, 0
    %v559 = vmul.bf16 %v555, 1009007652
    %v560 = vmul.bf16 %v556, 1009007652
    %v561 = vsel %vm557, %v555, %v559
    %v562 = vsel %vm558, %v556, %v560
    %v563 = vld [vmem:[#allocation9] sm:$0xff]
    %v564 = vld [vmem:[#allocation9 + $0x8] sm:$0xff]
    %v565 = vld [vmem:[#allocation9 + $0x10] sm:$0xff]
    %v566 = vld [vmem:[#allocation9 + $0x18] sm:$0xff]
    %v567 = vld [vmem:[#allocation9 + $0x20] sm:$0xff]
    %v568 = vld [vmem:[#allocation9 + $0x28] sm:$0xff]
    %v569 = vld [vmem:[#allocation9 + $0x30] sm:$0xff]
    %v570 = vld [vmem:[#allocation9 + $0x38] sm:$0xff]
    %v571 = vld [vmem:[#allocation9 + $0x40] sm:$0xff]
    %v572 = vld [vmem:[#allocation9 + $0x48] sm:$0xff]
    %v573 = vld [vmem:[#allocation9 + $0x50] sm:$0xff]
    %v574 = vld [vmem:[#allocation9 + $0x58] sm:$0xff]
    %v575 = vld [vmem:[#allocation9 + $0x60] sm:$0xff]
    %v576 = vld [vmem:[#allocation9 + $0x68] sm:$0xff]
    %v577 = vld [vmem:[#allocation9 + $0x70] sm:$0xff]
    %v578 = vld [vmem:[#allocation9 + $0x78] sm:$0xff]
    %v579 = vld [vmem:[#allocation9 + $0x80] sm:$0xff]
    %v580 = vld [vmem:[#allocation9 + $0x88] sm:$0xff]
    %v581 = vld [vmem:[#allocation9 + $0x90] sm:$0xff]
    %v582 = vld [vmem:[#allocation9 + $0x98] sm:$0xff]
    %v583 = vld [vmem:[#allocation9 + $0xa0] sm:$0xff]
    %v584 = vld [vmem:[#allocation9 + $0xa8] sm:$0xff]
    %v585 = vld [vmem:[#allocation9 + $0xb0] sm:$0xff]
    %v586 = vld [vmem:[#allocation9 + $0xb8] sm:$0xff]
    %v587 = vld [vmem:[#allocation9 + $0xc0] sm:$0xff]
    %v588 = vld [vmem:[#allocation9 + $0xc8] sm:$0xff]
    %v589 = vld [vmem:[#allocation9 + $0xd0] sm:$0xff]
    %v590 = vld [vmem:[#allocation9 + $0xd8] sm:$0xff]
    %v591 = vld [vmem:[#allocation9 + $0xe0] sm:$0xff]
    %v592 = vld [vmem:[#allocation9 + $0xe8] sm:$0xff]
    %v593 = vld [vmem:[#allocation9 + $0xf0] sm:$0xff]
    %v594 = vld [vmem:[#allocation9 + $0xf8] sm:$0xff]
    %v595 = vld [vmem:[#allocation9 + $0x100] sm:$0xff]
    %v596 = vld [vmem:[#allocation9 + $0x108] sm:$0xff]
    %v597 = vld [vmem:[#allocation9 + $0x110] sm:$0xff]
    %v598 = vld [vmem:[#allocation9 + $0x118] sm:$0xff]
    %v599 = vld [vmem:[#allocation9 + $0x120] sm:$0xff]
    %v600 = vld [vmem:[#allocation9 + $0x128] sm:$0xff]
    %v601 = vld [vmem:[#allocation9 + $0x130] sm:$0xff]
    %v602 = vld [vmem:[#allocation9 + $0x138] sm:$0xff]
    %v603 = vld [vmem:[#allocation9 + $0x140] sm:$0xff]
    %v604 = vld [vmem:[#allocation9 + $0x148] sm:$0xff]
    %v605 = vld [vmem:[#allocation9 + $0x150] sm:$0xff]
    %v606 = vld [vmem:[#allocation9 + $0x158] sm:$0xff]
    %v607 = vld [vmem:[#allocation9 + $0x160] sm:$0xff]
    %v608 = vld [vmem:[#allocation9 + $0x168] sm:$0xff]
    %v609 = vld [vmem:[#allocation9 + $0x170] sm:$0xff]
    %v610 = vld [vmem:[#allocation9 + $0x178] sm:$0xff]
    %v611 = vld [vmem:[#allocation9 + $0x180] sm:$0xff]
    %v612 = vld [vmem:[#allocation9 + $0x188] sm:$0xff]
    %v613 = vld [vmem:[#allocation9 + $0x190] sm:$0xff]
    %v614 = vld [vmem:[#allocation9 + $0x198] sm:$0xff]
    %v615 = vld [vmem:[#allocation9 + $0x1a0] sm:$0xff]
    %v616 = vld [vmem:[#allocation9 + $0x1a8] sm:$0xff]
    %v617 = vld [vmem:[#allocation9 + $0x1b0] sm:$0xff]
    %v618 = vld [vmem:[#allocation9 + $0x1b8] sm:$0xff]
    %v619 = vld [vmem:[#allocation9 + $0x1c0] sm:$0xff]
    %v620 = vld [vmem:[#allocation9 + $0x1c8] sm:$0xff]
    %v621 = vld [vmem:[#allocation9 + $0x1d0] sm:$0xff]
    %v622 = vld [vmem:[#allocation9 + $0x1d8] sm:$0xff]
    %v623 = vld [vmem:[#allocation9 + $0x1e0] sm:$0xff]
    %v624 = vld [vmem:[#allocation9 + $0x1e8] sm:$0xff]
    %v625 = vld [vmem:[#allocation9 + $0x1f0] sm:$0xff]
    %v626 = vld [vmem:[#allocation9 + $0x1f8] sm:$0xff]
    %v691 = vunpack.c.l.b16 %v563
    %v692 = vunpack.c.h.b16 %v563
    %v693 = vunpack.c.l.b16 %v564
    %v694 = vunpack.c.h.b16 %v564
    %v695 = vunpack.c.l.b16 %v565
    %v696 = vunpack.c.h.b16 %v565
    %v697 = vunpack.c.l.b16 %v566
    %v698 = vunpack.c.h.b16 %v566
    %v699 = vunpack.c.l.b16 %v567
    %v700 = vunpack.c.h.b16 %v567
    %v701 = vunpack.c.l.b16 %v568
    %v702 = vunpack.c.h.b16 %v568
    %v703 = vunpack.c.l.b16 %v569
    %v704 = vunpack.c.h.b16 %v569
    %v705 = vunpack.c.l.b16 %v570
    %v706 = vunpack.c.h.b16 %v570
    %v707 = vunpack.c.l.b16 %v571
    %v708 = vunpack.c.h.b16 %v571
    %v709 = vunpack.c.l.b16 %v572
    %v710 = vunpack.c.h.b16 %v572
    %v711 = vunpack.c.l.b16 %v573
    %v712 = vunpack.c.h.b16 %v573
    %v713 = vunpack.c.l.b16 %v574
    %v714 = vunpack.c.h.b16 %v574
    %v715 = vunpack.c.l.b16 %v575
    %v716 = vunpack.c.h.b16 %v575
    %v717 = vunpack.c.l.b16 %v576
    %v718 = vunpack.c.h.b16 %v576
    %v719 = vunpack.c.l.b16 %v577
    %v720 = vunpack.c.h.b16 %v577
    %v721 = vunpack.c.l.b16 %v578
    %v722 = vunpack.c.h.b16 %v578
    %v723 = vunpack.c.l.b16 %v579
    %v724 = vunpack.c.h.b16 %v579
    %v725 = vunpack.c.l.b16 %v580
    %v726 = vunpack.c.h.b16 %v580
    %v727 = vunpack.c.l.b16 %v581
    %v728 = vunpack.c.h.b16 %v581
    %v729 = vunpack.c.l.b16 %v582
    %v730 = vunpack.c.h.b16 %v582
    %v731 = vunpack.c.l.b16 %v583
    %v732 = vunpack.c.h.b16 %v583
    %v733 = vunpack.c.l.b16 %v584
    %v734 = vunpack.c.h.b16 %v584
    %v735 = vunpack.c.l.b16 %v585
    %v736 = vunpack.c.h.b16 %v585
    %v737 = vunpack.c.l.b16 %v586
    %v738 = vunpack.c.h.b16 %v586
    %v739 = vunpack.c.l.b16 %v587
    %v740 = vunpack.c.h.b16 %v587
    %v741 = vunpack.c.l.b16 %v588
    %v742 = vunpack.c.h.b16 %v588
    %v743 = vunpack.c.l.b16 %v589
    %v744 = vunpack.c.h.b16 %v589
    %v745 = vunpack.c.l.b16 %v590
    %v746 = vunpack.c.h.b16 %v590
    %v747 = vunpack.c.l.b16 %v591
    %v748 = vunpack.c.h.b16 %v591
    %v749 = vunpack.c.l.b16 %v592
    %v750 = vunpack.c.h.b16 %v592
    %v751 = vunpack.c.l.b16 %v593
    %v752 = vunpack.c.h.b16 %v593
    %v753 = vunpack.c.l.b16 %v594
    %v754 = vunpack.c.h.b16 %v594
    %v755 = vunpack.c.l.b16 %v595
    %v756 = vunpack.c.h.b16 %v595
    %v757 = vunpack.c.l.b16 %v596
    %v758 = vunpack.c.h.b16 %v596
    %v759 = vunpack.c.l.b16 %v597
    %v760 = vunpack.c.h.b16 %v597
    %v761 = vunpack.c.l.b16 %v598
    %v762 = vunpack.c.h.b16 %v598
    %v763 = vunpack.c.l.b16 %v599
    %v764 = vunpack.c.h.b16 %v599
    %v765 = vunpack.c.l.b16 %v600
    %v766 = vunpack.c.h.b16 %v600
    %v767 = vunpack.c.l.b16 %v601
    %v768 = vunpack.c.h.b16 %v601
    %v769 = vunpack.c.l.b16 %v602
    %v770 = vunpack.c.h.b16 %v602
    %v771 = vunpack.c.l.b16 %v603
    %v772 = vunpack.c.h.b16 %v603
    %v773 = vunpack.c.l.b16 %v604
    %v774 = vunpack.c.h.b16 %v604
    %v775 = vunpack.c.l.b16 %v605
    %v776 = vunpack.c.h.b16 %v605
    %v777 = vunpack.c.l.b16 %v606
    %v778 = vunpack.c.h.b16 %v606
    %v779 = vunpack.c.l.b16 %v607
    %v780 = vunpack.c.h.b16 %v607
    %v781 = vunpack.c.l.b16 %v608
    %v782 = vunpack.c.h.b16 %v608
    %v783 = vunpack.c.l.b16 %v609
    %v784 = vunpack.c.h.b16 %v609
    %v785 = vunpack.c.l.b16 %v610
    %v786 = vunpack.c.h.b16 %v610
    %v787 = vunpack.c.l.b16 %v611
    %v788 = vunpack.c.h.b16 %v611
    %v789 = vunpack.c.l.b16 %v612
    %v790 = vunpack.c.h.b16 %v612
    %v791 = vunpack.c.l.b16 %v613
    %v792 = vunpack.c.h.b16 %v613
    %v793 = vunpack.c.l.b16 %v614
    %v794 = vunpack.c.h.b16 %v614
    %v795 = vunpack.c.l.b16 %v615
    %v796 = vunpack.c.h.b16 %v615
    %v797 = vunpack.c.l.b16 %v616
    %v798 = vunpack.c.h.b16 %v616
    %v799 = vunpack.c.l.b16 %v617
    %v800 = vunpack.c.h.b16 %v617
    %v801 = vunpack.c.l.b16 %v618
    %v802 = vunpack.c.h.b16 %v618
    %v803 = vunpack.c.l.b16 %v619
    %v804 = vunpack.c.h.b16 %v619
    %v805 = vunpack.c.l.b16 %v620
    %v806 = vunpack.c.h.b16 %v620
    %v807 = vunpack.c.l.b16 %v621
    %v808 = vunpack.c.h.b16 %v621
    %v809 = vunpack.c.l.b16 %v622
    %v810 = vunpack.c.h.b16 %v622
    %v811 = vunpack.c.l.b16 %v623
    %v812 = vunpack.c.h.b16 %v623
    %v813 = vunpack.c.l.b16 %v624
    %v814 = vunpack.c.h.b16 %v624
    %v815 = vunpack.c.l.b16 %v625
    %v816 = vunpack.c.h.b16 %v625
    %v817 = vunpack.c.l.b16 %v626
    %v818 = vunpack.c.h.b16 %v626
    %v819 = vpack.c.b16 %v695, %v691
    %v820 = vpack.c.b16 %v696, %v692
    %v821 = vpack.c.b16 %v697, %v693
    %v822 = vpack.c.b16 %v698, %v694
    %v823 = vpack.c.b16 %v703, %v699
    %v824 = vpack.c.b16 %v704, %v700
    %v825 = vpack.c.b16 %v705, %v701
    %v826 = vpack.c.b16 %v706, %v702
    %v827 = vpack.c.b16 %v711, %v707
    %v828 = vpack.c.b16 %v712, %v708
    %v829 = vpack.c.b16 %v713, %v709
    %v830 = vpack.c.b16 %v714, %v710
    %v831 = vpack.c.b16 %v719, %v715
    %v832 = vpack.c.b16 %v720, %v716
    %v833 = vpack.c.b16 %v721, %v717
    %v834 = vpack.c.b16 %v722, %v718
    %v835 = vpack.c.b16 %v727, %v723
    %v836 = vpack.c.b16 %v728, %v724
    %v837 = vpack.c.b16 %v729, %v725
    %v838 = vpack.c.b16 %v730, %v726
    %v839 = vpack.c.b16 %v735, %v731
    %v840 = vpack.c.b16 %v736, %v732
    %v841 = vpack.c.b16 %v737, %v733
    %v842 = vpack.c.b16 %v738, %v734
    %v843 = vpack.c.b16 %v743, %v739
    %v844 = vpack.c.b16 %v744, %v740
    %v845 = vpack.c.b16 %v745, %v741
    %v846 = vpack.c.b16 %v746, %v742
    %v847 = vpack.c.b16 %v751, %v747
    %v848 = vpack.c.b16 %v752, %v748
    %v849 = vpack.c.b16 %v753, %v749
    %v850 = vpack.c.b16 %v754, %v750
    %v851 = vpack.c.b16 %v759, %v755
    %v852 = vpack.c.b16 %v760, %v756
    %v853 = vpack.c.b16 %v761, %v757
    %v854 = vpack.c.b16 %v762, %v758
    %v855 = vpack.c.b16 %v767, %v763
    %v856 = vpack.c.b16 %v768, %v764
    %v857 = vpack.c.b16 %v769, %v765
    %v858 = vpack.c.b16 %v770, %v766
    %v859 = vpack.c.b16 %v775, %v771
    %v860 = vpack.c.b16 %v776, %v772
    %v861 = vpack.c.b16 %v777, %v773
    %v862 = vpack.c.b16 %v778, %v774
    %v863 = vpack.c.b16 %v783, %v779
    %v864 = vpack.c.b16 %v784, %v780
    %v865 = vpack.c.b16 %v785, %v781
    %v866 = vpack.c.b16 %v786, %v782
    %v867 = vpack.c.b16 %v791, %v787
    %v868 = vpack.c.b16 %v792, %v788
    %v869 = vpack.c.b16 %v793, %v789
    %v870 = vpack.c.b16 %v794, %v790
    %v871 = vpack.c.b16 %v799, %v795
    %v872 = vpack.c.b16 %v800, %v796
    %v873 = vpack.c.b16 %v801, %v797
    %v874 = vpack.c.b16 %v802, %v798
    %v875 = vpack.c.b16 %v807, %v803
    %v876 = vpack.c.b16 %v808, %v804
    %v877 = vpack.c.b16 %v809, %v805
    %v878 = vpack.c.b16 %v810, %v806
    %v879 = vpack.c.b16 %v815, %v811
    %v880 = vpack.c.b16 %v816, %v812
    %v881 = vpack.c.b16 %v817, %v813
    %v882 = vpack.c.b16 %v818, %v814
    %947 = vmatprep.subr.bf16.mxu0 %v848
    %948 = vmatpush1.bf16.msra.mxu0 %v847
    %949 = vmatprep.subr.bf16.mxu0 %v844
    %950 = vmatpush1.bf16.msra.mxu0 %v843
    %951 = vmatprep.subr.bf16.mxu0 %v840
    %952 = vmatpush1.bf16.msra.mxu0 %v839
    %953 = vmatprep.subr.bf16.mxu0 %v836
    %954 = vmatpush1.bf16.msra.mxu0 %v835
    %955 = vmatprep.subr.bf16.mxu0 %v832
    %956 = vmatpush1.bf16.msra.mxu0 %v831
    %957 = vmatprep.subr.bf16.mxu0 %v828
    %958 = vmatpush1.bf16.msra.mxu0 %v827
    %959 = vmatprep.subr.bf16.mxu0 %v824
    %960 = vmatpush1.bf16.msra.mxu0 %v823
    %961 = vmatprep.subr.bf16.mxu0 %v820
    %962 = vmatpush1.bf16.msra.mxu0 %v819
    %963 = vmatprep.subr.bf16.mxu0 %v880
    %964 = vmatpush2.bf16.msra.mxu0 %v879
    %965 = vmatprep.subr.bf16.mxu0 %v876
    %966 = vmatpush2.bf16.msra.mxu0 %v875
    %967 = vmatprep.subr.bf16.mxu0 %v872
    %968 = vmatpush2.bf16.msra.mxu0 %v871
    %969 = vmatprep.subr.bf16.mxu0 %v868
    %970 = vmatpush2.bf16.msra.mxu0 %v867
    %971 = vmatprep.subr.bf16.mxu0 %v864
    %972 = vmatpush2.bf16.msra.mxu0 %v863
    %973 = vmatprep.subr.bf16.mxu0 %v860
    %974 = vmatpush2.bf16.msra.mxu0 %v859
    %975 = vmatprep.subr.bf16.mxu0 %v856
    %976 = vmatpush2.bf16.msra.mxu0 %v855
    %977 = vmatprep.subr.bf16.mxu0 %v852
    %978 = vmatpush2.bf16.msra.mxu0 %v851
    %979 = vmatprep.mubr.bf16.mxu0 %v562
    %980 = vmatmul.mubr.bf16.gmra.mxu0 %v561
    %v981 = vpop.f32.mrf.mxu0
    %v982 = vadd.f32 0.0, %v981
    %v983 = vpop.f32.mrf.mxu0
    %v984 = vadd.f32 0.0, %v983
    %v985 = vpop.f32.mrf.mxu0
    %v986 = vpop.f32.mrf.mxu0
    %987 = vdwg.mxu0
    %988 = vmatprep.subr.bf16.mxu0 %v850
    %989 = vmatpush1.bf16.msra.mxu0 %v849
    %990 = vmatprep.subr.bf16.mxu0 %v846
    %991 = vmatpush1.bf16.msra.mxu0 %v845
    %992 = vmatprep.subr.bf16.mxu0 %v842
    %993 = vmatpush1.bf16.msra.mxu0 %v841
    %994 = vmatprep.subr.bf16.mxu0 %v838
    %995 = vmatpush1.bf16.msra.mxu0 %v837
    %996 = vmatprep.subr.bf16.mxu0 %v834
    %997 = vmatpush1.bf16.msra.mxu0 %v833
    %998 = vmatprep.subr.bf16.mxu0 %v830
    %999 = vmatpush1.bf16.msra.mxu0 %v829
    %1000 = vmatprep.subr.bf16.mxu0 %v826
    %1001 = vmatpush1.bf16.msra.mxu0 %v825
    %1002 = vmatprep.subr.bf16.mxu0 %v822
    %1003 = vmatpush1.bf16.msra.mxu0 %v821
    %1004 = vmatprep.subr.bf16.mxu0 %v882
    %1005 = vmatpush2.bf16.msra.mxu0 %v881
    %1006 = vmatprep.subr.bf16.mxu0 %v878
    %1007 = vmatpush2.bf16.msra.mxu0 %v877
    %1008 = vmatprep.subr.bf16.mxu0 %v874
    %1009 = vmatpush2.bf16.msra.mxu0 %v873
    %1010 = vmatprep.subr.bf16.mxu0 %v870
    %1011 = vmatpush2.bf16.msra.mxu0 %v869
    %1012 = vmatprep.subr.bf16.mxu0 %v866
    %1013 = vmatpush2.bf16.msra.mxu0 %v865
    %1014 = vmatprep.subr.bf16.mxu0 %v862
    %1015 = vmatpush2.bf16.msra.mxu0 %v861
    %1016 = vmatprep.subr.bf16.mxu0 %v858
    %1017 = vmatpush2.bf16.msra.mxu0 %v857
    %1018 = vmatprep.subr.bf16.mxu0 %v854
    %1019 = vmatpush2.bf16.msra.mxu0 %v853
    %1020 = vmatprep.mubr.bf16.mxu0 %v562
    %1021 = vmatmul.mubr.bf16.gmra.mxu0 %v561
    %v1022 = vpop.f32.mrf.mxu0
    %v1023 = vadd.f32 0.0, %v1022
    %v1024 = vpop.f32.mrf.mxu0
    %v1025 = vadd.f32 0.0, %v1024
    %v1026 = vpop.f32.mrf.mxu0
    %v1027 = vpop.f32.mrf.mxu0
    %1028 = vdwg.mxu0
    %v1029 = vpack.c.bf16 %v982, %v982
    %v1030 = vpack.c.bf16 %v984, %v984
    %v1031 = vpack.c.bf16 %v1023, %v1023
    %v1032 = vpack.c.bf16 %v1025, %v1025
    %s1033 = scalar_lea.vmem [#allocation2], 4
    %v1034 = vld [vmem:[%s1033] ss:$8 sm:$0xf]
    %v1036 = vlaneseq
    %v1037 = vshrl.u32 %v1036, 7
    %v1038 = vsub.s32 0, %v1037
    %v1039 = vrot.slane %v1034, %v1038
    %v1040 = vlaneseq
    %v1041 = vshrl.u32 %v1040, 7
    %v1042 = vsub.s32 1, %v1041
    %v1043 = vrot.slane %v1034, %v1042
    %v1044 = vlaneseq
    %v1045 = vshrl.u32 %v1044, 7
    %v1046 = vsub.s32 2, %v1045
    %v1047 = vrot.slane %v1034, %v1046
    %v1048 = vlaneseq
    %v1049 = vshrl.u32 %v1048, 7
    %v1050 = vsub.s32 3, %v1049
    %v1051 = vrot.slane %v1034, %v1050
    %v1056 = vpack.c.bf16 %v1039, %v1039
    %v1057 = vpack.c.bf16 %v1043, %v1043
    %v1058 = vpack.c.bf16 %v1047, %v1047
    %v1059 = vpack.c.bf16 %v1051, %v1051
    %v1061 = vpack.i.b16 %v1056, %v1056
    %v1063 = vlaneseq
    %v1064 = vshrl.u32 %v1063, 7
    %v1065 = vsub.s32 0, %v1064
    %v1066 = vrot.slane %v1061, %v1065
    %v1068 = vpack.i.b16 %v1057, %v1057
    %v1070 = vlaneseq
    %v1071 = vshrl.u32 %v1070, 7
    %v1072 = vsub.s32 0, %v1071
    %v1073 = vrot.slane %v1068, %v1072
    %v1075 = vpack.i.b16 %v1058, %v1058
    %v1077 = vlaneseq
    %v1078 = vshrl.u32 %v1077, 7
    %v1079 = vsub.s32 0, %v1078
    %v1080 = vrot.slane %v1075, %v1079
    %v1082 = vpack.i.b16 %v1059, %v1059
    %v1084 = vlaneseq
    %v1085 = vshrl.u32 %v1084, 7
    %v1086 = vsub.s32 0, %v1085
    %v1087 = vrot.slane %v1082, %v1086
    %v1088 = vadd.bf16 %v1029, %v1066
    %v1089 = vadd.bf16 %v1030, %v1073
    %v1090 = vadd.bf16 %v1031, %v1080
    %v1091 = vadd.bf16 %v1032, %v1087
    %vm1092 = vcmp.gt.bf16.partialorder %v1088, 0
    %vm1093 = vcmp.gt.bf16.partialorder %v1089, 0
    %vm1094 = vcmp.gt.bf16.partialorder %v1090, 0
    %vm1095 = vcmp.gt.bf16.partialorder %v1091, 0
    %v1096 = vmul.bf16 %v1088, 1009007652
    %v1097 = vmul.bf16 %v1089, 1009007652
    %v1098 = vmul.bf16 %v1090, 1009007652
    %v1099 = vmul.bf16 %v1091, 1009007652
    %v1100 = vsel %vm1092, %v1088, %v1096
    %v1101 = vsel %vm1093, %v1089, %v1097
    %v1102 = vsel %vm1094, %v1090, %v1098
    %v1103 = vsel %vm1095, %v1091, %v1099
    %v1104 = vld [vmem:[#allocation10] sm:$0xff]
    %v1105 = vld [vmem:[#allocation10 + $0x8] sm:$0xff]
    %v1106 = vld [vmem:[#allocation10 + $0x10] sm:$0xff]
    %v1107 = vld [vmem:[#allocation10 + $0x18] sm:$0xff]
    %v1108 = vld [vmem:[#allocation10 + $0x20] sm:$0xff]
    %v1109 = vld [vmem:[#allocation10 + $0x28] sm:$0xff]
    %v1110 = vld [vmem:[#allocation10 + $0x30] sm:$0xff]
    %v1111 = vld [vmem:[#allocation10 + $0x38] sm:$0xff]
    %v1112 = vld [vmem:[#allocation10 + $0x40] sm:$0xff]
    %v1113 = vld [vmem:[#allocation10 + $0x48] sm:$0xff]
    %v1114 = vld [vmem:[#allocation10 + $0x50] sm:$0xff]
    %v1115 = vld [vmem:[#allocation10 + $0x58] sm:$0xff]
    %v1116 = vld [vmem:[#allocation10 + $0x60] sm:$0xff]
    %v1117 = vld [vmem:[#allocation10 + $0x68] sm:$0xff]
    %v1118 = vld [vmem:[#allocation10 + $0x70] sm:$0xff]
    %v1119 = vld [vmem:[#allocation10 + $0x78] sm:$0xff]
    %v1120 = vld [vmem:[#allocation10 + $0x80] sm:$0xff]
    %v1121 = vld [vmem:[#allocation10 + $0x88] sm:$0xff]
    %v1122 = vld [vmem:[#allocation10 + $0x90] sm:$0xff]
    %v1123 = vld [vmem:[#allocation10 + $0x98] sm:$0xff]
    %v1124 = vld [vmem:[#allocation10 + $0xa0] sm:$0xff]
    %v1125 = vld [vmem:[#allocation10 + $0xa8] sm:$0xff]
    %v1126 = vld [vmem:[#allocation10 + $0xb0] sm:$0xff]
    %v1127 = vld [vmem:[#allocation10 + $0xb8] sm:$0xff]
    %v1128 = vld [vmem:[#allocation10 + $0xc0] sm:$0xff]
    %v1129 = vld [vmem:[#allocation10 + $0xc8] sm:$0xff]
    %v1130 = vld [vmem:[#allocation10 + $0xd0] sm:$0xff]
    %v1131 = vld [vmem:[#allocation10 + $0xd8] sm:$0xff]
    %v1132 = vld [vmem:[#allocation10 + $0xe0] sm:$0xff]
    %v1133 = vld [vmem:[#allocation10 + $0xe8] sm:$0xff]
    %v1134 = vld [vmem:[#allocation10 + $0xf0] sm:$0xff]
    %v1135 = vld [vmem:[#allocation10 + $0xf8] sm:$0xff]
    %v1136 = vld [vmem:[#allocation10 + $0x100] sm:$0xff]
    %v1137 = vld [vmem:[#allocation10 + $0x108] sm:$0xff]
    %v1138 = vld [vmem:[#allocation10 + $0x110] sm:$0xff]
    %v1139 = vld [vmem:[#allocation10 + $0x118] sm:$0xff]
    %v1140 = vld [vmem:[#allocation10 + $0x120] sm:$0xff]
    %v1141 = vld [vmem:[#allocation10 + $0x128] sm:$0xff]
    %v1142 = vld [vmem:[#allocation10 + $0x130] sm:$0xff]
    %v1143 = vld [vmem:[#allocation10 + $0x138] sm:$0xff]
    %v1144 = vld [vmem:[#allocation10 + $0x140] sm:$0xff]
    %v1145 = vld [vmem:[#allocation10 + $0x148] sm:$0xff]
    %v1146 = vld [vmem:[#allocation10 + $0x150] sm:$0xff]
    %v1147 = vld [vmem:[#allocation10 + $0x158] sm:$0xff]
    %v1148 = vld [vmem:[#allocation10 + $0x160] sm:$0xff]
    %v1149 = vld [vmem:[#allocation10 + $0x168] sm:$0xff]
    %v1150 = vld [vmem:[#allocation10 + $0x170] sm:$0xff]
    %v1151 = vld [vmem:[#allocation10 + $0x178] sm:$0xff]
    %v1152 = vld [vmem:[#allocation10 + $0x180] sm:$0xff]
    %v1153 = vld [vmem:[#allocation10 + $0x188] sm:$0xff]
    %v1154 = vld [vmem:[#allocation10 + $0x190] sm:$0xff]
    %v1155 = vld [vmem:[#allocation10 + $0x198] sm:$0xff]
    %v1156 = vld [vmem:[#allocation10 + $0x1a0] sm:$0xff]
    %v1157 = vld [vmem:[#allocation10 + $0x1a8] sm:$0xff]
    %v1158 = vld [vmem:[#allocation10 + $0x1b0] sm:$0xff]
    %v1159 = vld [vmem:[#allocation10 + $0x1b8] sm:$0xff]
    %v1160 = vld [vmem:[#allocation10 + $0x1c0] sm:$0xff]
    %v1161 = vld [vmem:[#allocation10 + $0x1c8] sm:$0xff]
    %v1162 = vld [vmem:[#allocation10 + $0x1d0] sm:$0xff]
    %v1163 = vld [vmem:[#allocation10 + $0x1d8] sm:$0xff]
    %v1164 = vld [vmem:[#allocation10 + $0x1e0] sm:$0xff]
    %v1165 = vld [vmem:[#allocation10 + $0x1e8] sm:$0xff]
    %v1166 = vld [vmem:[#allocation10 + $0x1f0] sm:$0xff]
    %v1167 = vld [vmem:[#allocation10 + $0x1f8] sm:$0xff]
    %s1168 = scalar_lea.vmem [#allocation2], 5
    %v1169 = vld [vmem:[%s1168] ss:$8 sm:$0x3]
    %v1171 = vlaneseq
    %v1172 = vshrl.u32 %v1171, 7
    %v1173 = vsub.s32 0, %v1172
    %v1174 = vrot.slane %v1169, %v1173
    %v1175 = vlaneseq
    %v1176 = vshrl.u32 %v1175, 7
    %v1177 = vsub.s32 1, %v1176
    %v1178 = vrot.slane %v1169, %v1177
    %v1245 = vunpack.c.l.b16 %v1104
    %v1246 = vunpack.c.h.b16 %v1104
    %v1247 = vunpack.c.l.b16 %v1105
    %v1248 = vunpack.c.h.b16 %v1105
    %v1249 = vunpack.c.l.b16 %v1106
    %v1250 = vunpack.c.h.b16 %v1106
    %v1251 = vunpack.c.l.b16 %v1107
    %v1252 = vunpack.c.h.b16 %v1107
    %v1253 = vunpack.c.l.b16 %v1108
    %v1254 = vunpack.c.h.b16 %v1108
    %v1255 = vunpack.c.l.b16 %v1109
    %v1256 = vunpack.c.h.b16 %v1109
    %v1257 = vunpack.c.l.b16 %v1110
    %v1258 = vunpack.c.h.b16 %v1110
    %v1259 = vunpack.c.l.b16 %v1111
    %v1260 = vunpack.c.h.b16 %v1111
    %v1261 = vunpack.c.l.b16 %v1112
    %v1262 = vunpack.c.h.b16 %v1112
    %v1263 = vunpack.c.l.b16 %v1113
    %v1264 = vunpack.c.h.b16 %v1113
    %v1265 = vunpack.c.l.b16 %v1114
    %v1266 = vunpack.c.h.b16 %v1114
    %v1267 = vunpack.c.l.b16 %v1115
    %v1268 = vunpack.c.h.b16 %v1115
    %v1269 = vunpack.c.l.b16 %v1116
    %v1270 = vunpack.c.h.b16 %v1116
    %v1271 = vunpack.c.l.b16 %v1117
    %v1272 = vunpack.c.h.b16 %v1117
    %v1273 = vunpack.c.l.b16 %v1118
    %v1274 = vunpack.c.h.b16 %v1118
    %v1275 = vunpack.c.l.b16 %v1119
    %v1276 = vunpack.c.h.b16 %v1119
    %v1277 = vunpack.c.l.b16 %v1120
    %v1278 = vunpack.c.h.b16 %v1120
    %v1279 = vunpack.c.l.b16 %v1121
    %v1280 = vunpack.c.h.b16 %v1121
    %v1281 = vunpack.c.l.b16 %v1122
    %v1282 = vunpack.c.h.b16 %v1122
    %v1283 = vunpack.c.l.b16 %v1123
    %v1284 = vunpack.c.h.b16 %v1123
    %v1285 = vunpack.c.l.b16 %v1124
    %v1286 = vunpack.c.h.b16 %v1124
    %v1287 = vunpack.c.l.b16 %v1125
    %v1288 = vunpack.c.h.b16 %v1125
    %v1289 = vunpack.c.l.b16 %v1126
    %v1290 = vunpack.c.h.b16 %v1126
    %v1291 = vunpack.c.l.b16 %v1127
    %v1292 = vunpack.c.h.b16 %v1127
    %v1293 = vunpack.c.l.b16 %v1128
    %v1294 = vunpack.c.h.b16 %v1128
    %v1295 = vunpack.c.l.b16 %v1129
    %v1296 = vunpack.c.h.b16 %v1129
    %v1297 = vunpack.c.l.b16 %v1130
    %v1298 = vunpack.c.h.b16 %v1130
    %v1299 = vunpack.c.l.b16 %v1131
    %v1300 = vunpack.c.h.b16 %v1131
    %v1301 = vunpack.c.l.b16 %v1132
    %v1302 = vunpack.c.h.b16 %v1132
    %v1303 = vunpack.c.l.b16 %v1133
    %v1304 = vunpack.c.h.b16 %v1133
    %v1305 = vunpack.c.l.b16 %v1134
    %v1306 = vunpack.c.h.b16 %v1134
    %v1307 = vunpack.c.l.b16 %v1135
    %v1308 = vunpack.c.h.b16 %v1135
    %v1309 = vunpack.c.l.b16 %v1136
    %v1310 = vunpack.c.h.b16 %v1136
    %v1311 = vunpack.c.l.b16 %v1137
    %v1312 = vunpack.c.h.b16 %v1137
    %v1313 = vunpack.c.l.b16 %v1138
    %v1314 = vunpack.c.h.b16 %v1138
    %v1315 = vunpack.c.l.b16 %v1139
    %v1316 = vunpack.c.h.b16 %v1139
    %v1317 = vunpack.c.l.b16 %v1140
    %v1318 = vunpack.c.h.b16 %v1140
    %v1319 = vunpack.c.l.b16 %v1141
    %v1320 = vunpack.c.h.b16 %v1141
    %v1321 = vunpack.c.l.b16 %v1142
    %v1322 = vunpack.c.h.b16 %v1142
    %v1323 = vunpack.c.l.b16 %v1143
    %v1324 = vunpack.c.h.b16 %v1143
    %v1325 = vunpack.c.l.b16 %v1144
    %v1326 = vunpack.c.h.b16 %v1144
    %v1327 = vunpack.c.l.b16 %v1145
    %v1328 = vunpack.c.h.b16 %v1145
    %v1329 = vunpack.c.l.b16 %v1146
    %v1330 = vunpack.c.h.b16 %v1146
    %v1331 = vunpack.c.l.b16 %v1147
    %v1332 = vunpack.c.h.b16 %v1147
    %v1333 = vunpack.c.l.b16 %v1148
    %v1334 = vunpack.c.h.b16 %v1148
    %v1335 = vunpack.c.l.b16 %v1149
    %v1336 = vunpack.c.h.b16 %v1149
    %v1337 = vunpack.c.l.b16 %v1150
    %v1338 = vunpack.c.h.b16 %v1150
    %v1339 = vunpack.c.l.b16 %v1151
    %v1340 = vunpack.c.h.b16 %v1151
    %v1341 = vunpack.c.l.b16 %v1152
    %v1342 = vunpack.c.h.b16 %v1152
    %v1343 = vunpack.c.l.b16 %v1153
    %v1344 = vunpack.c.h.b16 %v1153
    %v1345 = vunpack.c.l.b16 %v1154
    %v1346 = vunpack.c.h.b16 %v1154
    %v1347 = vunpack.c.l.b16 %v1155
    %v1348 = vunpack.c.h.b16 %v1155
    %v1349 = vunpack.c.l.b16 %v1156
    %v1350 = vunpack.c.h.b16 %v1156
    %v1351 = vunpack.c.l.b16 %v1157
    %v1352 = vunpack.c.h.b16 %v1157
    %v1353 = vunpack.c.l.b16 %v1158
    %v1354 = vunpack.c.h.b16 %v1158
    %v1355 = vunpack.c.l.b16 %v1159
    %v1356 = vunpack.c.h.b16 %v1159
    %v1357 = vunpack.c.l.b16 %v1160
    %v1358 = vunpack.c.h.b16 %v1160
    %v1359 = vunpack.c.l.b16 %v1161
    %v1360 = vunpack.c.h.b16 %v1161
    %v1361 = vunpack.c.l.b16 %v1162
    %v1362 = vunpack.c.h.b16 %v1162
    %v1363 = vunpack.c.l.b16 %v1163
    %v1364 = vunpack.c.h.b16 %v1163
    %v1365 = vunpack.c.l.b16 %v1164
    %v1366 = vunpack.c.h.b16 %v1164
    %v1367 = vunpack.c.l.b16 %v1165
    %v1368 = vunpack.c.h.b16 %v1165
    %v1369 = vunpack.c.l.b16 %v1166
    %v1370 = vunpack.c.h.b16 %v1166
    %v1371 = vunpack.c.l.b16 %v1167
    %v1372 = vunpack.c.h.b16 %v1167
    %v1373 = vpack.c.b16 %v1247, %v1245
    %v1374 = vpack.c.b16 %v1248, %v1246
    %v1375 = vpack.c.b16 %v1251, %v1249
    %v1376 = vpack.c.b16 %v1252, %v1250
    %v1377 = vpack.c.b16 %v1255, %v1253
    %v1378 = vpack.c.b16 %v1256, %v1254
    %v1379 = vpack.c.b16 %v1259, %v1257
    %v1380 = vpack.c.b16 %v1260, %v1258
    %v1381 = vpack.c.b16 %v1263, %v1261
    %v1382 = vpack.c.b16 %v1264, %v1262
    %v1383 = vpack.c.b16 %v1267, %v1265
    %v1384 = vpack.c.b16 %v1268, %v1266
    %v1385 = vpack.c.b16 %v1271, %v1269
    %v1386 = vpack.c.b16 %v1272, %v1270
    %v1387 = vpack.c.b16 %v1275, %v1273
    %v1388 = vpack.c.b16 %v1276, %v1274
    %v1389 = vpack.c.b16 %v1279, %v1277
    %v1390 = vpack.c.b16 %v1280, %v1278
    %v1391 = vpack.c.b16 %v1283, %v1281
    %v1392 = vpack.c.b16 %v1284, %v1282
    %v1393 = vpack.c.b16 %v1287, %v1285
    %v1394 = vpack.c.b16 %v1288, %v1286
    %v1395 = vpack.c.b16 %v1291, %v1289
    %v1396 = vpack.c.b16 %v1292, %v1290
    %v1397 = vpack.c.b16 %v1295, %v1293
    %v1398 = vpack.c.b16 %v1296, %v1294
    %v1399 = vpack.c.b16 %v1299, %v1297
    %v1400 = vpack.c.b16 %v1300, %v1298
    %v1401 = vpack.c.b16 %v1303, %v1301
    %v1402 = vpack.c.b16 %v1304, %v1302
    %v1403 = vpack.c.b16 %v1307, %v1305
    %v1404 = vpack.c.b16 %v1308, %v1306
    %v1405 = vpack.c.b16 %v1311, %v1309
    %v1406 = vpack.c.b16 %v1312, %v1310
    %v1407 = vpack.c.b16 %v1315, %v1313
    %v1408 = vpack.c.b16 %v1316, %v1314
    %v1409 = vpack.c.b16 %v1319, %v1317
    %v1410 = vpack.c.b16 %v1320, %v1318
    %v1411 = vpack.c.b16 %v1323, %v1321
    %v1412 = vpack.c.b16 %v1324, %v1322
    %v1413 = vpack.c.b16 %v1327, %v1325
    %v1414 = vpack.c.b16 %v1328, %v1326
    %v1415 = vpack.c.b16 %v1331, %v1329
    %v1416 = vpack.c.b16 %v1332, %v1330
    %v1417 = vpack.c.b16 %v1335, %v1333
    %v1418 = vpack.c.b16 %v1336, %v1334
    %v1419 = vpack.c.b16 %v1339, %v1337
    %v1420 = vpack.c.b16 %v1340, %v1338
    %v1421 = vpack.c.b16 %v1343, %v1341
    %v1422 = vpack.c.b16 %v1344, %v1342
    %v1423 = vpack.c.b16 %v1347, %v1345
    %v1424 = vpack.c.b16 %v1348, %v1346
    %v1425 = vpack.c.b16 %v1351, %v1349
    %v1426 = vpack.c.b16 %v1352, %v1350
    %v1427 = vpack.c.b16 %v1355, %v1353
    %v1428 = vpack.c.b16 %v1356, %v1354
    %v1429 = vpack.c.b16 %v1359, %v1357
    %v1430 = vpack.c.b16 %v1360, %v1358
    %v1431 = vpack.c.b16 %v1363, %v1361
    %v1432 = vpack.c.b16 %v1364, %v1362
    %v1433 = vpack.c.b16 %v1367, %v1365
    %v1434 = vpack.c.b16 %v1368, %v1366
    %v1435 = vpack.c.b16 %v1371, %v1369
    %v1436 = vpack.c.b16 %v1372, %v1370
    %1501 = vmatprep.subr.bf16.mxu0 %v1388
    %1502 = vmatpush1.bf16.msra.mxu0 %v1387
    %1503 = vmatprep.subr.bf16.mxu0 %v1386
    %1504 = vmatpush1.bf16.msra.mxu0 %v1385
    %1505 = vmatprep.subr.bf16.mxu0 %v1384
    %1506 = vmatpush1.bf16.msra.mxu0 %v1383
    %1507 = vmatprep.subr.bf16.mxu0 %v1382
    %1508 = vmatpush1.bf16.msra.mxu0 %v1381
    %1509 = vmatprep.subr.bf16.mxu0 %v1380
    %1510 = vmatpush1.bf16.msra.mxu0 %v1379
    %1511 = vmatprep.subr.bf16.mxu0 %v1378
    %1512 = vmatpush1.bf16.msra.mxu0 %v1377
    %1513 = vmatprep.subr.bf16.mxu0 %v1376
    %1514 = vmatpush1.bf16.msra.mxu0 %v1375
    %1515 = vmatprep.subr.bf16.mxu0 %v1374
    %1516 = vmatpush1.bf16.msra.mxu0 %v1373
    %1517 = vmatprep.subr.bf16.mxu0 %v1404
    %1518 = vmatpush2.bf16.msra.mxu0 %v1403
    %1519 = vmatprep.subr.bf16.mxu0 %v1402
    %1520 = vmatpush2.bf16.msra.mxu0 %v1401
    %1521 = vmatprep.subr.bf16.mxu0 %v1400
    %1522 = vmatpush2.bf16.msra.mxu0 %v1399
    %1523 = vmatprep.subr.bf16.mxu0 %v1398
    %1524 = vmatpush2.bf16.msra.mxu0 %v1397
    %1525 = vmatprep.subr.bf16.mxu0 %v1396
    %1526 = vmatpush2.bf16.msra.mxu0 %v1395
    %1527 = vmatprep.subr.bf16.mxu0 %v1394
    %1528 = vmatpush2.bf16.msra.mxu0 %v1393
    %1529 = vmatprep.subr.bf16.mxu0 %v1392
    %1530 = vmatpush2.bf16.msra.mxu0 %v1391
    %1531 = vmatprep.subr.bf16.mxu0 %v1390
    %1532 = vmatpush2.bf16.msra.mxu0 %v1389
    %1533 = vmatprep.mubr.bf16.mxu0 %v1101
    %1534 = vmatmul.mubr.bf16.gmra.mxu0 %v1100
    %v1535 = vpop.f32.mrf.mxu0
    %v1536 = vadd.f32 %v1174, %v1535
    %v1537 = vpop.f32.mrf.mxu0
    %v1538 = vadd.f32 %v1178, %v1537
    %v1539 = vpop.f32.mrf.mxu0
    %v1540 = vpop.f32.mrf.mxu0
    %1541 = vdwg.mxu0
    %1542 = vmatprep.subr.bf16.mxu0 %v1420
    %1543 = vmatpush1.bf16.msra.mxu0 %v1419
    %1544 = vmatprep.subr.bf16.mxu0 %v1418
    %1545 = vmatpush1.bf16.msra.mxu0 %v1417
    %1546 = vmatprep.subr.bf16.mxu0 %v1416
    %1547 = vmatpush1.bf16.msra.mxu0 %v1415
    %1548 = vmatprep.subr.bf16.mxu0 %v1414
    %1549 = vmatpush1.bf16.msra.mxu0 %v1413
    %1550 = vmatprep.subr.bf16.mxu0 %v1412
    %1551 = vmatpush1.bf16.msra.mxu0 %v1411
    %1552 = vmatprep.subr.bf16.mxu0 %v1410
    %1553 = vmatpush1.bf16.msra.mxu0 %v1409
    %1554 = vmatprep.subr.bf16.mxu0 %v1408
    %1555 = vmatpush1.bf16.msra.mxu0 %v1407
    %1556 = vmatprep.subr.bf16.mxu0 %v1406
    %1557 = vmatpush1.bf16.msra.mxu0 %v1405
    %1558 = vmatprep.subr.bf16.mxu0 %v1436
    %1559 = vmatpush2.bf16.msra.mxu0 %v1435
    %1560 = vmatprep.subr.bf16.mxu0 %v1434
    %1561 = vmatpush2.bf16.msra.mxu0 %v1433
    %1562 = vmatprep.subr.bf16.mxu0 %v1432
    %1563 = vmatpush2.bf16.msra.mxu0 %v1431
    %1564 = vmatprep.subr.bf16.mxu0 %v1430
    %1565 = vmatpush2.bf16.msra.mxu0 %v1429
    %1566 = vmatprep.subr.bf16.mxu0 %v1428
    %1567 = vmatpush2.bf16.msra.mxu0 %v1427
    %1568 = vmatprep.subr.bf16.mxu0 %v1426
    %1569 = vmatpush2.bf16.msra.mxu0 %v1425
    %1570 = vmatprep.subr.bf16.mxu0 %v1424
    %1571 = vmatpush2.bf16.msra.mxu0 %v1423
    %1572 = vmatprep.subr.bf16.mxu0 %v1422
    %1573 = vmatpush2.bf16.msra.mxu0 %v1421
    %1574 = vmatprep.mubr.bf16.mxu0 %v1103
    %1575 = vmatmul.mubr.bf16.gmra.mxu0 %v1102
    %v1576 = vpop.f32.mrf.mxu0
    %v1577 = vadd.f32 %v1536, %v1576
    %v1578 = vpop.f32.mrf.mxu0
    %v1579 = vadd.f32 %v1538, %v1578
    %v1580 = vpop.f32.mrf.mxu0
    %v1581 = vpop.f32.mrf.mxu0
    %1582 = vdwg.mxu0
    %1583 = vst [vmem:[%s8] sm:$0xff] %v1577
    %1584 = vst [vmem:[%s8 + $0x8] sm:$0xff] %v1579
    // Predicated region
    $region58: #{decoder_forward.1} parent=1 // pred_check
      _
    $region59: #{decoder_forward.1} parent=1 // pred_check_branch
      %1586 = sbr.rel (0) target = $region61
    $region60: #{decoder_forward.1} parent=1 // pred_region
      _
    $region61: #{decoder_forward.1} parent=1 // pred_fallthru
      _
    // Predicated region
    $region62: #{decoder_forward.1} parent=1 // pred_check
      _
    $region63: #{decoder_forward.1} parent=1 // pred_check_branch
      %1588 = sbr.rel (0) target = $region65
    $region64: #{decoder_forward.1} parent=1 // pred_region
      _
    $region65: #{decoder_forward.1} parent=1 // pred_fallthru
      _
    %1589 = vsyncpa [#allocation3], 1
    %1590 = vsyncpa [#allocation5], 1
    %1591 = vsyncpa [#allocation8], 1
    %1592 = vsyncpa [#allocation11], 1

</llo_original>
